<compile_context>
chip_gen: v5e
topology: v5e:2x2
jax: 0.10.0
libtpu: 0.0.40
codegen_flags: <defaults>
</compile_context>

<pallas_src>
import functools

import jax
import jax.numpy as jnp
from jax.experimental import pallas as pl
from jax.experimental.pallas import tpu as pltpu


def _round_up(x, m):
    return (x + m - 1) // m * m


# ----------------------------------------------------------------------------
# Fused Pallas kernel: whole Decoder.forward in one launch
# ----------------------------------------------------------------------------
def _decoder_kernel(obs_ref, st_ref, fg_w_ref, fg_b_ref,
                    c1w_ref, c1b_ref, c2w_ref, c2b_ref,
                    fc1w_ref, fc1b_ref, fc2w_ref, fc2b_ref,
                    wbx_ref, wbh_ref, bb_ref, wh_ref, bh_ref, wp_ref, bp_ref,
                    h0_ref,
                    y_ref, hout_ref,
                    p1_ref, p2_ref,
                    *, B, cin, gc, act_lower, act_upper):
    f32 = jnp.float32
    ctot = cin + gc
    rs = _round_up(B, 8)          # row stride per spatial position (8-aligned)
    hid = 64                      # CfC hidden size

    # ---- fg: Linear(14 -> gc) ----
    g = jnp.dot(st_ref[...], fg_w_ref[...], preferred_element_type=f32) + fg_b_ref[...]   # (B, gc)
    obs = obs_ref[...]            # (4*B, cin): rows are [spatial s, batch b]

    # ---- conv1 (k=2, stride=1, pad=1) as a single im2col matmul ----
    # p1 rows: output position q (3x3) * rs + b ; cols: tap-major [t*ctot + c]
    p1_ref[...] = jnp.zeros_like(p1_ref)
    for q in range(9):
        oi, oj = q // 3, q % 3
        for t in range(4):
            kh, kw = t // 2, t % 2
            ih, iw = oi - 1 + kh, oj - 1 + kw
            if 0 <= ih < 2 and 0 <= iw < 2:          # in-bounds tap (else stays zero = padding)
                s = ih * 2 + iw
                r0, c0 = q * rs, t * ctot
                p1_ref[r0:r0 + B, c0:c0 + cin] = obs[s * B:(s + 1) * B, :]
                p1_ref[r0:r0 + B, c0 + cin:c0 + ctot] = g          # goal channels (spatially const)
    y1 = jnp.dot(p1_ref[...], c1w_ref[...], preferred_element_type=f32) + c1b_ref[...]
    y1 = jnp.maximum(y1, 0.0)                        # (9*rs, 256), rows q*rs..q*rs+B-1 valid

    # ---- conv2 (k=2, stride=1, pad=0) as a single im2col matmul ----
    p2_ref[...] = jnp.zeros_like(p2_ref)
    for q2 in range(4):                              # conv2 output position (2x2)
        oi2, oj2 = q2 // 2, q2 % 2
        for t in range(4):
            kh, kw = t // 2, t % 2
            q = (oi2 + kh) * 3 + (oj2 + kw)
            p2_ref[q2 * rs:q2 * rs + B, t * 256:(t + 1) * 256] = y1[q * rs:q * rs + B, :]
    y2 = jnp.dot(p2_ref[...], c2w_ref[...], preferred_element_type=f32) + c2b_ref[...]
    y2 = jnp.maximum(y2, 0.0)                        # (4*rs, 128)

    # ---- torch.flatten(x, 1): features ordered (spatial q2, channel) to match permuted fc1_w ----
    flat = jnp.concatenate([y2[q2 * rs:q2 * rs + B, :] for q2 in range(4)], axis=1)    # (B, 512)

    # ---- fc1, fc2 ----
    f = jnp.maximum(jnp.dot(flat, fc1w_ref[...], preferred_element_type=f32) + fc1b_ref[...], 0.0)
    x = jnp.maximum(jnp.dot(f, fc2w_ref[...], preferred_element_type=f32) + fc2b_ref[...], 0.0)   # (B, 128)

    # ---- CfC RNN (ncps default mode).  2-D input => unbatched: seq_len = B, batch = 1. ----
    # Input-side backbone term is batched outside the serial recurrence.
    xz = jnp.dot(x, wbx_ref[...], preferred_element_type=f32) + bb_ref[...]            # (B, 128)
    wbh = wbh_ref[...]                               # (64, 128) hidden-side backbone
    wh = wh_ref[...]                                 # (128, 256) = [ff1 | ff2 | time_a | time_b]
    bh = bh_ref[...]                                 # (1, 256)
    h = h0_ref[...]                                  # (1, 64)
    hs = []
    for t in range(B):                               # fully unrolled recurrence
        z = xz[t:t + 1, :] + jnp.dot(h, wbh, preferred_element_type=f32)
        z = 1.7159 * jnp.tanh(0.666 * z)             # lecun_tanh backbone activation
        heads = jnp.dot(z, wh, preferred_element_type=f32) + bh                        # (1, 256)
        ff1 = jnp.tanh(heads[:, 0:hid])
        ff2 = jnp.tanh(heads[:, hid:2 * hid])
        t_interp = jax.nn.sigmoid(heads[:, 2 * hid:3 * hid] + heads[:, 3 * hid:4 * hid])  # ts == 1.0
        h = ff1 * (1.0 - t_interp) + t_interp * ff2
        hs.append(h)
    hout_ref[...] = h

    # ---- projection + tanh + action rescale, batched after the recurrence ----
    hseq = jnp.concatenate(hs, axis=0)               # (B, 64)
    y = jnp.dot(hseq, wp_ref[...], preferred_element_type=f32) + bp_ref[...]
    y = jnp.tanh(y)
    y_ref[...] = (act_upper - act_lower) * (y + 1.0) * 0.5 + act_lower


# ----------------------------------------------------------------------------
# Parameter init (deterministic, synthetic) -- PyTorch-compatible layouts
# ----------------------------------------------------------------------------
def _lin(key, fan_in, fan_out):
    kw, kb = jax.random.split(key)
    bound = 1.0 / jnp.sqrt(jnp.float32(fan_in))
    w = jax.random.uniform(kw, (fan_in, fan_out), jnp.float32, -bound, bound)
    b = jax.random.uniform(kb, (1, fan_out), jnp.float32, -bound, bound)
    return w, b


def init_params(key, in_channels, goal_channels, action_size):
    ctot = in_channels + goal_channels
    keys = jax.random.split(key, 11)
    p = {}
    p["fg_w"], p["fg_b"] = _lin(keys[0], 14, goal_channels)
    p["conv1_w"], p["conv1_b"] = _lin(keys[1], ctot * 4, 256)     # rows in (c, kh, kw) order
    p["conv2_w"], p["conv2_b"] = _lin(keys[2], 256 * 4, 128)      # rows in (c, kh, kw) order
    p["fc1_w"], p["fc1_b"] = _lin(keys[3], 512, 256)              # rows in NCHW-flatten (c*4+q) order
    p["fc2_w"], p["fc2_b"] = _lin(keys[4], 256, 128)
    # CfC(128 -> 64, proj=action_size): backbone (128+64)->128, heads 128->64, proj 64->a
    wb, p["cfc_bb"] = _lin(keys[5], 128 + 64, 128)
    p["cfc_wbx"], p["cfc_wbh"] = wb[:128], wb[128:]
    p["cfc_wff1"], p["cfc_bff1"] = _lin(keys[6], 128, 64)
    p["cfc_wff2"], p["cfc_bff2"] = _lin(keys[7], 128, 64)
    p["cfc_wta"], p["cfc_bta"] = _lin(keys[8], 128, 64)
    p["cfc_wtb"], p["cfc_btb"] = _lin(keys[9], 128, 64)
    p["cfc_wp"], p["cfc_bp"] = _lin(keys[10], 64, action_size)
    return p


# ----------------------------------------------------------------------------
# Decoder forward: tiny one-time layout prep, then ONE fused Pallas kernel
# ----------------------------------------------------------------------------
@functools.partial(jax.jit, static_argnames=("action_lower", "action_upper"))
def decoder_forward(params, obs, state, hx=None, *,
                    action_lower=-2.0, action_upper=2.0):
    B, cin, H, W = obs.shape
    assert (H, W) == (2, 2), "fc1(512) implies 2x2 spatial conv output"
    gc = params["fg_w"].shape[1]
    ctot = cin + gc
    a = params["cfc_wp"].shape[1]
    rs = _round_up(B, 8)

    # Input layout: obs NCHW -> rows [spatial s = h*2+w, batch b], channels on lanes.
    obs_sp = jnp.transpose(obs.reshape(B, cin, 4), (2, 0, 1)).reshape(4 * B, cin)
    state14 = state[:, 0:14]

    # One-time weight permutations: PyTorch (c,kh,kw) / NCHW-flatten -> kernel tap-major layouts.
    c1w = params["conv1_w"].reshape(ctot, 4, 256).transpose(1, 0, 2).reshape(4 * ctot, 256)
    c2w = params["conv2_w"].reshape(256, 4, 128).transpose(1, 0, 2).reshape(1024, 128)
    fc1w = params["fc1_w"].reshape(128, 4, 256).transpose(1, 0, 2).reshape(512, 256)
    w_heads = jnp.concatenate([params["cfc_wff1"], params["cfc_wff2"],
                               params["cfc_wta"], params["cfc_wtb"]], axis=1)    # (128, 256)
    b_heads = jnp.concatenate([params["cfc_bff1"], params["cfc_bff2"],
                               params["cfc_bta"], params["cfc_btb"]], axis=1)    # (1, 256)

    h0 = (jnp.zeros((1, 64), jnp.float32) if hx is None
          else jnp.reshape(hx, (1, 64)).astype(jnp.float32))

    args = (obs_sp, state14, params["fg_w"], params["fg_b"],
            c1w, params["conv1_b"], c2w, params["conv2_b"],
            fc1w, params["fc1_b"], params["fc2_w"], params["fc2_b"],
            params["cfc_wbx"], params["cfc_wbh"], params["cfc_bb"],
            w_heads, b_heads, params["cfc_wp"], params["cfc_bp"], h0)

    def full_spec(arr):
        n = arr.ndim
        return pl.BlockSpec(arr.shape, lambda i, n=n: (0,) * n)

    y, h_final = pl.pallas_call(
        functools.partial(_decoder_kernel, B=B, cin=cin, gc=gc,
                          act_lower=float(action_lower), act_upper=float(action_upper)),
        out_shape=(jax.ShapeDtypeStruct((B, a), jnp.float32),
                   jax.ShapeDtypeStruct((1, 64), jnp.float32)),
        grid=(1,),
        in_specs=[full_spec(arr) for arr in args],
        out_specs=(pl.BlockSpec((B, a), lambda i: (0, 0)),
                   pl.BlockSpec((1, 64), lambda i: (0, 0))),
        scratch_shapes=[pltpu.VMEM((9 * rs, 4 * ctot), jnp.float32),   # conv1 im2col
                        pltpu.VMEM((4 * rs, 1024), jnp.float32)],      # conv2 im2col
        compiler_params=pltpu.CompilerParams(dimension_semantics=("arbitrary",)),
    )(*args)
    # TODO(synk): for large batches, add an M-tiled grid (parallel axis) for the conv/fc
    # matmuls so v7x's second TensorCore gets work and VMEM stays bounded.
    return y, h_final[0]                                               # hx -> shape (64,)


# ----------------------------------------------------------------------------
if __name__ == "__main__":
    B, IN_CH, GOAL_CH, ACTION_SIZE = 2, 4, 8, 6
    ACTION_LOWER, ACTION_UPPER = -2.0, 2.0

    params = init_params(jax.random.PRNGKey(0), IN_CH, GOAL_CH, ACTION_SIZE)

    k_obs, k_state = jax.random.split(jax.random.PRNGKey(0))
    obs = jax.random.normal(k_obs, (B, IN_CH, 2, 2), jnp.float32)    # NCHW, 2x2 spatial
    state = jax.random.normal(k_state, (B, 16), jnp.float32)         # >= 14 features

    actions, hx = decoder_forward(params, obs, state, hx=None,
                                  action_lower=ACTION_LOWER,
                                  action_upper=ACTION_UPPER)
    jax.block_until_ready((actions, hx))
    assert actions.shape == (B, ACTION_SIZE) and hx.shape == (64,)
    assert bool(jnp.all(jnp.isfinite(actions))) and bool(jnp.all(jnp.isfinite(hx)))
    print("KERNEL_OK")
</pallas_src>

<mosaic_0001>
module attributes {stable_mosaic.version = 11 : i64} {
  func.func @_decoder_kernel(%arg0: i32, %arg1: memref<8x4xf32, #tpu.memory_space<vmem>>, %arg2: memref<2x14xf32, #tpu.memory_space<vmem>>, %arg3: memref<14x8xf32, #tpu.memory_space<vmem>>, %arg4: memref<1x8xf32, #tpu.memory_space<vmem>>, %arg5: memref<48x256xf32, #tpu.memory_space<vmem>>, %arg6: memref<1x256xf32, #tpu.memory_space<vmem>>, %arg7: memref<1024x128xf32, #tpu.memory_space<vmem>>, %arg8: memref<1x128xf32, #tpu.memory_space<vmem>>, %arg9: memref<512x256xf32, #tpu.memory_space<vmem>>, %arg10: memref<1x256xf32, #tpu.memory_space<vmem>>, %arg11: memref<256x128xf32, #tpu.memory_space<vmem>>, %arg12: memref<1x128xf32, #tpu.memory_space<vmem>>, %arg13: memref<128x128xf32, #tpu.memory_space<vmem>>, %arg14: memref<64x128xf32, #tpu.memory_space<vmem>>, %arg15: memref<1x128xf32, #tpu.memory_space<vmem>>, %arg16: memref<128x256xf32, #tpu.memory_space<vmem>>, %arg17: memref<1x256xf32, #tpu.memory_space<vmem>>, %arg18: memref<64x6xf32, #tpu.memory_space<vmem>>, %arg19: memref<1x6xf32, #tpu.memory_space<vmem>>, %arg20: memref<1x64xf32, #tpu.memory_space<vmem>>, %arg21: memref<2x6xf32, #tpu.memory_space<vmem>>, %arg22: memref<1x64xf32, #tpu.memory_space<vmem>>, %arg23: memref<72x48xf32, #tpu.memory_space<vmem>>, %arg24: memref<32x1024xf32, #tpu.memory_space<vmem>>) attributes {dimension_semantics = [#tpu.dimension_semantics<arbitrary>], iteration_bounds = array<i64: 1>, scalar_prefetch = 0 : i64, scratch_operands = 2 : i64, tpu.core_type = #tpu.core_type<tc>, window_params = [{pipeline_mode = #tpu.pipeline_mode<synchronous>, transform_indices = @transform_0, window_bounds = array<i64: 8, 4>}, {pipeline_mode = #tpu.pipeline_mode<synchronous>, transform_indices = @transform_1, window_bounds = array<i64: 2, 14>}, {pipeline_mode = #tpu.pipeline_mode<synchronous>, transform_indices = @transform_2, window_bounds = array<i64: 14, 8>}, {pipeline_mode = #tpu.pipeline_mode<synchronous>, transform_indices = @transform_3, window_bounds = array<i64: 1, 8>}, {pipeline_mode = #tpu.pipeline_mode<synchronous>, transform_indices = @transform_4, window_bounds = array<i64: 48, 256>}, {pipeline_mode = #tpu.pipeline_mode<synchronous>, transform_indices = @transform_5, window_bounds = array<i64: 1, 256>}, {pipeline_mode = #tpu.pipeline_mode<synchronous>, transform_indices = @transform_6, window_bounds = array<i64: 1024, 128>}, {pipeline_mode = #tpu.pipeline_mode<synchronous>, transform_indices = @transform_7, window_bounds = array<i64: 1, 128>}, {pipeline_mode = #tpu.pipeline_mode<synchronous>, transform_indices = @transform_8, window_bounds = array<i64: 512, 256>}, {pipeline_mode = #tpu.pipeline_mode<synchronous>, transform_indices = @transform_9, window_bounds = array<i64: 1, 256>}, {pipeline_mode = #tpu.pipeline_mode<synchronous>, transform_indices = @transform_10, window_bounds = array<i64: 256, 128>}, {pipeline_mode = #tpu.pipeline_mode<synchronous>, transform_indices = @transform_11, window_bounds = array<i64: 1, 128>}, {pipeline_mode = #tpu.pipeline_mode<synchronous>, transform_indices = @transform_12, window_bounds = array<i64: 128, 128>}, {pipeline_mode = #tpu.pipeline_mode<synchronous>, transform_indices = @transform_13, window_bounds = array<i64: 64, 128>}, {pipeline_mode = #tpu.pipeline_mode<synchronous>, transform_indices = @transform_14, window_bounds = array<i64: 1, 128>}, {pipeline_mode = #tpu.pipeline_mode<synchronous>, transform_indices = @transform_15, window_bounds = array<i64: 128, 256>}, {pipeline_mode = #tpu.pipeline_mode<synchronous>, transform_indices = @transform_16, window_bounds = array<i64: 1, 256>}, {pipeline_mode = #tpu.pipeline_mode<synchronous>, transform_indices = @transform_17, window_bounds = array<i64: 64, 6>}, {pipeline_mode = #tpu.pipeline_mode<synchronous>, transform_indices = @transform_18, window_bounds = array<i64: 1, 6>}, {pipeline_mode = #tpu.pipeline_mode<synchronous>, transform_indices = @transform_19, window_bounds = array<i64: 1, 64>}, {pipeline_mode = #tpu.pipeline_mode<synchronous>, transform_indices = @transform_20, window_bounds = array<i64: 2, 6>}, {pipeline_mode = #tpu.pipeline_mode<synchronous>, transform_indices = @transform_21, window_bounds = array<i64: 1, 64>}]} {
    %c0 = arith.constant 0 : index
    %c0_0 = arith.constant 0 : index
    %0 = vector.load %arg2[%c0, %c0_0] : memref<2x14xf32, #tpu.memory_space<vmem>>, vector<2x14xf32>
    %c0_1 = arith.constant 0 : index
    %c0_2 = arith.constant 0 : index
    %1 = vector.load %arg3[%c0_1, %c0_2] : memref<14x8xf32, #tpu.memory_space<vmem>>, vector<14x8xf32>
    %cst = arith.constant dense<0.000000e+00> : vector<2x8xf32>
    %2 = tpu.matmul %0, %1, %cst {dimension_numbers = #tpu.dot_dimension_numbers<[1], [0], [0], [1], [0, 0, 1, 1], [], []>} : vector<2x14xf32>, vector<14x8xf32>, vector<2x8xf32> -> vector<2x8xf32>
    %c0_3 = arith.constant 0 : index
    %c0_4 = arith.constant 0 : index
    %3 = vector.load %arg4[%c0_3, %c0_4] : memref<1x8xf32, #tpu.memory_space<vmem>>, vector<1x8xf32>
    %4 = vector.broadcast %3 : vector<1x8xf32> to vector<2x8xf32>
    %5 = arith.addf %2, %4 : vector<2x8xf32>
    %c0_5 = arith.constant 0 : index
    %c0_6 = arith.constant 0 : index
    %6 = vector.load %arg1[%c0_5, %c0_6] : memref<8x4xf32, #tpu.memory_space<vmem>>, vector<8x4xf32>
    %cst_7 = arith.constant 0.000000e+00 : f32
    %7 = vector.broadcast %cst_7 : f32 to vector<72x48xf32>
    %c0_8 = arith.constant 0 : index
    %c0_9 = arith.constant 0 : index
    %8 = vector.load %arg23[%c0_8, %c0_9] : memref<72x48xf32, #tpu.memory_space<vmem>>, vector<72x48xf32>
    tpu.vector_store %arg23[%c0_8, %c0_9], %7 {strides = array<i32>} : memref<72x48xf32, #tpu.memory_space<vmem>>, vector<72x48xf32>,
    %9 = vector.extract_strided_slice %6 {offsets = [0, 0], sizes = [2, 4], strides = [1, 1]} : vector<8x4xf32> to vector<2x4xf32>
    %c0_10 = arith.constant 0 : index
    %c36 = arith.constant 36 : index
    %10 = vector.load %arg23[%c0_10, %c36] : memref<72x48xf32, #tpu.memory_space<vmem>>, vector<2x4xf32>
    tpu.vector_store %arg23[%c0_10, %c36], %9 {strides = array<i32>} : memref<72x48xf32, #tpu.memory_space<vmem>>, vector<2x4xf32>,
    %c0_11 = arith.constant 0 : index
    %c40 = arith.constant 40 : index
    %11 = vector.load %arg23[%c0_11, %c40] : memref<72x48xf32, #tpu.memory_space<vmem>>, vector<2x8xf32>
    tpu.vector_store %arg23[%c0_11, %c40], %5 {strides = array<i32>} : memref<72x48xf32, #tpu.memory_space<vmem>>, vector<2x8xf32>,
    %12 = vector.extract_strided_slice %6 {offsets = [0, 0], sizes = [2, 4], strides = [1, 1]} : vector<8x4xf32> to vector<2x4xf32>
    %c8 = arith.constant 8 : index
    %c24 = arith.constant 24 : index
    %13 = vector.load %arg23[%c8, %c24] : memref<72x48xf32, #tpu.memory_space<vmem>>, vector<2x4xf32>
    tpu.vector_store %arg23[%c8, %c24], %12 {strides = array<i32>} : memref<72x48xf32, #tpu.memory_space<vmem>>, vector<2x4xf32>,
    %c8_12 = arith.constant 8 : index
    %c28 = arith.constant 28 : index
    %14 = vector.load %arg23[%c8_12, %c28] : memref<72x48xf32, #tpu.memory_space<vmem>>, vector<2x8xf32>
    tpu.vector_store %arg23[%c8_12, %c28], %5 {strides = array<i32>} : memref<72x48xf32, #tpu.memory_space<vmem>>, vector<2x8xf32>,
    %15 = vector.extract_strided_slice %6 {offsets = [2, 0], sizes = [2, 4], strides = [1, 1]} : vector<8x4xf32> to vector<2x4xf32>
    %c8_13 = arith.constant 8 : index
    %c36_14 = arith.constant 36 : index
    %16 = vector.load %arg23[%c8_13, %c36_14] : memref<72x48xf32, #tpu.memory_space<vmem>>, vector<2x4xf32>
    tpu.vector_store %arg23[%c8_13, %c36_14], %15 {strides = array<i32>} : memref<72x48xf32, #tpu.memory_space<vmem>>, vector<2x4xf32>,
    %c8_15 = arith.constant 8 : index
    %c40_16 = arith.constant 40 : index
    %17 = vector.load %arg23[%c8_15, %c40_16] : memref<72x48xf32, #tpu.memory_space<vmem>>, vector<2x8xf32>
    tpu.vector_store %arg23[%c8_15, %c40_16], %5 {strides = array<i32>} : memref<72x48xf32, #tpu.memory_space<vmem>>, vector<2x8xf32>,
    %18 = vector.extract_strided_slice %6 {offsets = [2, 0], sizes = [2, 4], strides = [1, 1]} : vector<8x4xf32> to vector<2x4xf32>
    %c16 = arith.constant 16 : index
    %c24_17 = arith.constant 24 : index
    %19 = vector.load %arg23[%c16, %c24_17] : memref<72x48xf32, #tpu.memory_space<vmem>>, vector<2x4xf32>
    tpu.vector_store %arg23[%c16, %c24_17], %18 {strides = array<i32>} : memref<72x48xf32, #tpu.memory_space<vmem>>, vector<2x4xf32>,
    %c16_18 = arith.constant 16 : index
    %c28_19 = arith.constant 28 : index
    %20 = vector.load %arg23[%c16_18, %c28_19] : memref<72x48xf32, #tpu.memory_space<vmem>>, vector<2x8xf32>
    tpu.vector_store %arg23[%c16_18, %c28_19], %5 {strides = array<i32>} : memref<72x48xf32, #tpu.memory_space<vmem>>, vector<2x8xf32>,
    %21 = vector.extract_strided_slice %6 {offsets = [0, 0], sizes = [2, 4], strides = [1, 1]} : vector<8x4xf32> to vector<2x4xf32>
    %c24_20 = arith.constant 24 : index
    %c12 = arith.constant 12 : index
    %22 = vector.load %arg23[%c24_20, %c12] : memref<72x48xf32, #tpu.memory_space<vmem>>, vector<2x4xf32>
    tpu.vector_store %arg23[%c24_20, %c12], %21 {strides = array<i32>} : memref<72x48xf32, #tpu.memory_space<vmem>>, vector<2x4xf32>,
    %c24_21 = arith.constant 24 : index
    %c16_22 = arith.constant 16 : index
    %23 = vector.load %arg23[%c24_21, %c16_22] : memref<72x48xf32, #tpu.memory_space<vmem>>, vector<2x8xf32>
    tpu.vector_store %arg23[%c24_21, %c16_22], %5 {strides = array<i32>} : memref<72x48xf32, #tpu.memory_space<vmem>>, vector<2x8xf32>,
    %24 = vector.extract_strided_slice %6 {offsets = [4, 0], sizes = [2, 4], strides = [1, 1]} : vector<8x4xf32> to vector<2x4xf32>
    %c24_23 = arith.constant 24 : index
    %c36_24 = arith.constant 36 : index
    %25 = vector.load %arg23[%c24_23, %c36_24] : memref<72x48xf32, #tpu.memory_space<vmem>>, vector<2x4xf32>
    tpu.vector_store %arg23[%c24_23, %c36_24], %24 {strides = array<i32>} : memref<72x48xf32, #tpu.memory_space<vmem>>, vector<2x4xf32>,
    %c24_25 = arith.constant 24 : index
    %c40_26 = arith.constant 40 : index
    %26 = vector.load %arg23[%c24_25, %c40_26] : memref<72x48xf32, #tpu.memory_space<vmem>>, vector<2x8xf32>
    tpu.vector_store %arg23[%c24_25, %c40_26], %5 {strides = array<i32>} : memref<72x48xf32, #tpu.memory_space<vmem>>, vector<2x8xf32>,
    %27 = vector.extract_strided_slice %6 {offsets = [0, 0], sizes = [2, 4], strides = [1, 1]} : vector<8x4xf32> to vector<2x4xf32>
    %c32 = arith.constant 32 : index
    %c0_27 = arith.constant 0 : index
    %28 = vector.load %arg23[%c32, %c0_27] : memref<72x48xf32, #tpu.memory_space<vmem>>, vector<2x4xf32>
    tpu.vector_store %arg23[%c32, %c0_27], %27 {strides = array<i32>} : memref<72x48xf32, #tpu.memory_space<vmem>>, vector<2x4xf32>,
    %c32_28 = arith.constant 32 : index
    %c4 = arith.constant 4 : index
    %29 = vector.load %arg23[%c32_28, %c4] : memref<72x48xf32, #tpu.memory_space<vmem>>, vector<2x8xf32>
    tpu.vector_store %arg23[%c32_28, %c4], %5 {strides = array<i32>} : memref<72x48xf32, #tpu.memory_space<vmem>>, vector<2x8xf32>,
    %30 = vector.extract_strided_slice %6 {offsets = [2, 0], sizes = [2, 4], strides = [1, 1]} : vector<8x4xf32> to vector<2x4xf32>
    %c32_29 = arith.constant 32 : index
    %c12_30 = arith.constant 12 : index
    %31 = vector.load %arg23[%c32_29, %c12_30] : memref<72x48xf32, #tpu.memory_space<vmem>>, vector<2x4xf32>
    tpu.vector_store %arg23[%c32_29, %c12_30], %30 {strides = array<i32>} : memref<72x48xf32, #tpu.memory_space<vmem>>, vector<2x4xf32>,
    %c32_31 = arith.constant 32 : index
    %c16_32 = arith.constant 16 : index
    %32 = vector.load %arg23[%c32_31, %c16_32] : memref<72x48xf32, #tpu.memory_space<vmem>>, vector<2x8xf32>
    tpu.vector_store %arg23[%c32_31, %c16_32], %5 {strides = array<i32>} : memref<72x48xf32, #tpu.memory_space<vmem>>, vector<2x8xf32>,
    %33 = vector.extract_strided_slice %6 {offsets = [4, 0], sizes = [2, 4], strides = [1, 1]} : vector<8x4xf32> to vector<2x4xf32>
    %c32_33 = arith.constant 32 : index
    %c24_34 = arith.constant 24 : index
    %34 = vector.load %arg23[%c32_33, %c24_34] : memref<72x48xf32, #tpu.memory_space<vmem>>, vector<2x4xf32>
    tpu.vector_store %arg23[%c32_33, %c24_34], %33 {strides = array<i32>} : memref<72x48xf32, #tpu.memory_space<vmem>>, vector<2x4xf32>,
    %c32_35 = arith.constant 32 : index
    %c28_36 = arith.constant 28 : index
    %35 = vector.load %arg23[%c32_35, %c28_36] : memref<72x48xf32, #tpu.memory_space<vmem>>, vector<2x8xf32>
    tpu.vector_store %arg23[%c32_35, %c28_36], %5 {strides = array<i32>} : memref<72x48xf32, #tpu.memory_space<vmem>>, vector<2x8xf32>,
    %36 = vector.extract_strided_slice %6 {offsets = [6, 0], sizes = [2, 4], strides = [1, 1]} : vector<8x4xf32> to vector<2x4xf32>
    %c32_37 = arith.constant 32 : index
    %c36_38 = arith.constant 36 : index
    %37 = vector.load %arg23[%c32_37, %c36_38] : memref<72x48xf32, #tpu.memory_space<vmem>>, vector<2x4xf32>
    tpu.vector_store %arg23[%c32_37, %c36_38], %36 {strides = array<i32>} : memref<72x48xf32, #tpu.memory_space<vmem>>, vector<2x4xf32>,
    %c32_39 = arith.constant 32 : index
    %c40_40 = arith.constant 40 : index
    %38 = vector.load %arg23[%c32_39, %c40_40] : memref<72x48xf32, #tpu.memory_space<vmem>>, vector<2x8xf32>
    tpu.vector_store %arg23[%c32_39, %c40_40], %5 {strides = array<i32>} : memref<72x48xf32, #tpu.memory_space<vmem>>, vector<2x8xf32>,
    %39 = vector.extract_strided_slice %6 {offsets = [2, 0], sizes = [2, 4], strides = [1, 1]} : vector<8x4xf32> to vector<2x4xf32>
    %c40_41 = arith.constant 40 : index
    %c0_42 = arith.constant 0 : index
    %40 = vector.load %arg23[%c40_41, %c0_42] : memref<72x48xf32, #tpu.memory_space<vmem>>, vector<2x4xf32>
    tpu.vector_store %arg23[%c40_41, %c0_42], %39 {strides = array<i32>} : memref<72x48xf32, #tpu.memory_space<vmem>>, vector<2x4xf32>,
    %c40_43 = arith.constant 40 : index
    %c4_44 = arith.constant 4 : index
    %41 = vector.load %arg23[%c40_43, %c4_44] : memref<72x48xf32, #tpu.memory_space<vmem>>, vector<2x8xf32>
    tpu.vector_store %arg23[%c40_43, %c4_44], %5 {strides = array<i32>} : memref<72x48xf32, #tpu.memory_space<vmem>>, vector<2x8xf32>,
    %42 = vector.extract_strided_slice %6 {offsets = [6, 0], sizes = [2, 4], strides = [1, 1]} : vector<8x4xf32> to vector<2x4xf32>
    %c40_45 = arith.constant 40 : index
    %c24_46 = arith.constant 24 : index
    %43 = vector.load %arg23[%c40_45, %c24_46] : memref<72x48xf32, #tpu.memory_space<vmem>>, vector<2x4xf32>
    tpu.vector_store %arg23[%c40_45, %c24_46], %42 {strides = array<i32>} : memref<72x48xf32, #tpu.memory_space<vmem>>, vector<2x4xf32>,
    %c40_47 = arith.constant 40 : index
    %c28_48 = arith.constant 28 : index
    %44 = vector.load %arg23[%c40_47, %c28_48] : memref<72x48xf32, #tpu.memory_space<vmem>>, vector<2x8xf32>
    tpu.vector_store %arg23[%c40_47, %c28_48], %5 {strides = array<i32>} : memref<72x48xf32, #tpu.memory_space<vmem>>, vector<2x8xf32>,
    %45 = vector.extract_strided_slice %6 {offsets = [4, 0], sizes = [2, 4], strides = [1, 1]} : vector<8x4xf32> to vector<2x4xf32>
    %c48 = arith.constant 48 : index
    %c12_49 = arith.constant 12 : index
    %46 = vector.load %arg23[%c48, %c12_49] : memref<72x48xf32, #tpu.memory_space<vmem>>, vector<2x4xf32>
    tpu.vector_store %arg23[%c48, %c12_49], %45 {strides = array<i32>} : memref<72x48xf32, #tpu.memory_space<vmem>>, vector<2x4xf32>,
    %c48_50 = arith.constant 48 : index
    %c16_51 = arith.constant 16 : index
    %47 = vector.load %arg23[%c48_50, %c16_51] : memref<72x48xf32, #tpu.memory_space<vmem>>, vector<2x8xf32>
    tpu.vector_store %arg23[%c48_50, %c16_51], %5 {strides = array<i32>} : memref<72x48xf32, #tpu.memory_space<vmem>>, vector<2x8xf32>,
    %48 = vector.extract_strided_slice %6 {offsets = [4, 0], sizes = [2, 4], strides = [1, 1]} : vector<8x4xf32> to vector<2x4xf32>
    %c56 = arith.constant 56 : index
    %c0_52 = arith.constant 0 : index
    %49 = vector.load %arg23[%c56, %c0_52] : memref<72x48xf32, #tpu.memory_space<vmem>>, vector<2x4xf32>
    tpu.vector_store %arg23[%c56, %c0_52], %48 {strides = array<i32>} : memref<72x48xf32, #tpu.memory_space<vmem>>, vector<2x4xf32>,
    %c56_53 = arith.constant 56 : index
    %c4_54 = arith.constant 4 : index
    %50 = vector.load %arg23[%c56_53, %c4_54] : memref<72x48xf32, #tpu.memory_space<vmem>>, vector<2x8xf32>
    tpu.vector_store %arg23[%c56_53, %c4_54], %5 {strides = array<i32>} : memref<72x48xf32, #tpu.memory_space<vmem>>, vector<2x8xf32>,
    %51 = vector.extract_strided_slice %6 {offsets = [6, 0], sizes = [2, 4], strides = [1, 1]} : vector<8x4xf32> to vector<2x4xf32>
    %c56_55 = arith.constant 56 : index
    %c12_56 = arith.constant 12 : index
    %52 = vector.load %arg23[%c56_55, %c12_56] : memref<72x48xf32, #tpu.memory_space<vmem>>, vector<2x4xf32>
    tpu.vector_store %arg23[%c56_55, %c12_56], %51 {strides = array<i32>} : memref<72x48xf32, #tpu.memory_space<vmem>>, vector<2x4xf32>,
    %c56_57 = arith.constant 56 : index
    %c16_58 = arith.constant 16 : index
    %53 = vector.load %arg23[%c56_57, %c16_58] : memref<72x48xf32, #tpu.memory_space<vmem>>, vector<2x8xf32>
    tpu.vector_store %arg23[%c56_57, %c16_58], %5 {strides = array<i32>} : memref<72x48xf32, #tpu.memory_space<vmem>>, vector<2x8xf32>,
    %54 = vector.extract_strided_slice %6 {offsets = [6, 0], sizes = [2, 4], strides = [1, 1]} : vector<8x4xf32> to vector<2x4xf32>
    %c64 = arith.constant 64 : index
    %c0_59 = arith.constant 0 : index
    %55 = vector.load %arg23[%c64, %c0_59] : memref<72x48xf32, #tpu.memory_space<vmem>>, vector<2x4xf32>
    tpu.vector_store %arg23[%c64, %c0_59], %54 {strides = array<i32>} : memref<72x48xf32, #tpu.memory_space<vmem>>, vector<2x4xf32>,
    %c64_60 = arith.constant 64 : index
    %c4_61 = arith.constant 4 : index
    %56 = vector.load %arg23[%c64_60, %c4_61] : memref<72x48xf32, #tpu.memory_space<vmem>>, vector<2x8xf32>
    tpu.vector_store %arg23[%c64_60, %c4_61], %5 {strides = array<i32>} : memref<72x48xf32, #tpu.memory_space<vmem>>, vector<2x8xf32>,
    %c0_62 = arith.constant 0 : index
    %c0_63 = arith.constant 0 : index
    %57 = vector.load %arg23[%c0_62, %c0_63] : memref<72x48xf32, #tpu.memory_space<vmem>>, vector<72x48xf32>
    %c0_64 = arith.constant 0 : index
    %c0_65 = arith.constant 0 : index
    %58 = vector.load %arg5[%c0_64, %c0_65] : memref<48x256xf32, #tpu.memory_space<vmem>>, vector<48x256xf32>
    %cst_66 = arith.constant dense<0.000000e+00> : vector<72x256xf32>
    %59 = tpu.matmul %57, %58, %cst_66 {dimension_numbers = #tpu.dot_dimension_numbers<[1], [0], [0], [1], [0, 0, 1, 1], [], []>} : vector<72x48xf32>, vector<48x256xf32>, vector<72x256xf32> -> vector<72x256xf32>
    %c0_67 = arith.constant 0 : index
    %c0_68 = arith.constant 0 : index
    %60 = vector.load %arg6[%c0_67, %c0_68] : memref<1x256xf32, #tpu.memory_space<vmem>>, vector<1x256xf32>
    %61 = vector.broadcast %60 : vector<1x256xf32> to vector<72x256xf32>
    %62 = arith.addf %59, %61 : vector<72x256xf32>
    %cst_69 = arith.constant 0.000000e+00 : f32
    %63 = vector.broadcast %cst_69 : f32 to vector<72x256xf32>
    %64 = arith.maximumf %62, %63 : vector<72x256xf32>
    %cst_70 = arith.constant 0.000000e+00 : f32
    %65 = vector.broadcast %cst_70 : f32 to vector<32x1024xf32>
    %c0_71 = arith.constant 0 : index
    %c0_72 = arith.constant 0 : index
    %66 = vector.load %arg24[%c0_71, %c0_72] : memref<32x1024xf32, #tpu.memory_space<vmem>>, vector<32x1024xf32>
    tpu.vector_store %arg24[%c0_71, %c0_72], %65 {strides = array<i32>} : memref<32x1024xf32, #tpu.memory_space<vmem>>, vector<32x1024xf32>,
    %67 = vector.extract_strided_slice %64 {offsets = [0, 0], sizes = [2, 256], strides = [1, 1]} : vector<72x256xf32> to vector<2x256xf32>
    %c0_73 = arith.constant 0 : index
    %c0_74 = arith.constant 0 : index
    %68 = vector.load %arg24[%c0_73, %c0_74] : memref<32x1024xf32, #tpu.memory_space<vmem>>, vector<2x256xf32>
    tpu.vector_store %arg24[%c0_73, %c0_74], %67 {strides = array<i32>} : memref<32x1024xf32, #tpu.memory_space<vmem>>, vector<2x256xf32>,
    %69 = vector.extract_strided_slice %64 {offsets = [8, 0], sizes = [2, 256], strides = [1, 1]} : vector<72x256xf32> to vector<2x256xf32>
    %c0_75 = arith.constant 0 : index
    %c256 = arith.constant 256 : index
    %70 = vector.load %arg24[%c0_75, %c256] : memref<32x1024xf32, #tpu.memory_space<vmem>>, vector<2x256xf32>
    tpu.vector_store %arg24[%c0_75, %c256], %69 {strides = array<i32>} : memref<32x1024xf32, #tpu.memory_space<vmem>>, vector<2x256xf32>,
    %71 = vector.extract_strided_slice %64 {offsets = [24, 0], sizes = [2, 256], strides = [1, 1]} : vector<72x256xf32> to vector<2x256xf32>
    %c0_76 = arith.constant 0 : index
    %c512 = arith.constant 512 : index
    %72 = vector.load %arg24[%c0_76, %c512] : memref<32x1024xf32, #tpu.memory_space<vmem>>, vector<2x256xf32>
    tpu.vector_store %arg24[%c0_76, %c512], %71 {strides = array<i32>} : memref<32x1024xf32, #tpu.memory_space<vmem>>, vector<2x256xf32>,
    %73 = vector.extract_strided_slice %64 {offsets = [32, 0], sizes = [2, 256], strides = [1, 1]} : vector<72x256xf32> to vector<2x256xf32>
    %c0_77 = arith.constant 0 : index
    %c768 = arith.constant 768 : index
    %74 = vector.load %arg24[%c0_77, %c768] : memref<32x1024xf32, #tpu.memory_space<vmem>>, vector<2x256xf32>
    tpu.vector_store %arg24[%c0_77, %c768], %73 {strides = array<i32>} : memref<32x1024xf32, #tpu.memory_space<vmem>>, vector<2x256xf32>,
    %75 = vector.extract_strided_slice %64 {offsets = [8, 0], sizes = [2, 256], strides = [1, 1]} : vector<72x256xf32> to vector<2x256xf32>
    %c8_78 = arith.constant 8 : index
    %c0_79 = arith.constant 0 : index
    %76 = vector.load %arg24[%c8_78, %c0_79] : memref<32x1024xf32, #tpu.memory_space<vmem>>, vector<2x256xf32>
    tpu.vector_store %arg24[%c8_78, %c0_79], %75 {strides = array<i32>} : memref<32x1024xf32, #tpu.memory_space<vmem>>, vector<2x256xf32>,
    %77 = vector.extract_strided_slice %64 {offsets = [16, 0], sizes = [2, 256], strides = [1, 1]} : vector<72x256xf32> to vector<2x256xf32>
    %c8_80 = arith.constant 8 : index
    %c256_81 = arith.constant 256 : index
    %78 = vector.load %arg24[%c8_80, %c256_81] : memref<32x1024xf32, #tpu.memory_space<vmem>>, vector<2x256xf32>
    tpu.vector_store %arg24[%c8_80, %c256_81], %77 {strides = array<i32>} : memref<32x1024xf32, #tpu.memory_space<vmem>>, vector<2x256xf32>,
    %79 = vector.extract_strided_slice %64 {offsets = [32, 0], sizes = [2, 256], strides = [1, 1]} : vector<72x256xf32> to vector<2x256xf32>
    %c8_82 = arith.constant 8 : index
    %c512_83 = arith.constant 512 : index
    %80 = vector.load %arg24[%c8_82, %c512_83] : memref<32x1024xf32, #tpu.memory_space<vmem>>, vector<2x256xf32>
    tpu.vector_store %arg24[%c8_82, %c512_83], %79 {strides = array<i32>} : memref<32x1024xf32, #tpu.memory_space<vmem>>, vector<2x256xf32>,
    %81 = vector.extract_strided_slice %64 {offsets = [40, 0], sizes = [2, 256], strides = [1, 1]} : vector<72x256xf32> to vector<2x256xf32>
    %c8_84 = arith.constant 8 : index
    %c768_85 = arith.constant 768 : index
    %82 = vector.load %arg24[%c8_84, %c768_85] : memref<32x1024xf32, #tpu.memory_space<vmem>>, vector<2x256xf32>
    tpu.vector_store %arg24[%c8_84, %c768_85], %81 {strides = array<i32>} : memref<32x1024xf32, #tpu.memory_space<vmem>>, vector<2x256xf32>,
    %83 = vector.extract_strided_slice %64 {offsets = [24, 0], sizes = [2, 256], strides = [1, 1]} : vector<72x256xf32> to vector<2x256xf32>
    %c16_86 = arith.constant 16 : index
    %c0_87 = arith.constant 0 : index
    %84 = vector.load %arg24[%c16_86, %c0_87] : memref<32x1024xf32, #tpu.memory_space<vmem>>, vector<2x256xf32>
    tpu.vector_store %arg24[%c16_86, %c0_87], %83 {strides = array<i32>} : memref<32x1024xf32, #tpu.memory_space<vmem>>, vector<2x256xf32>,
    %85 = vector.extract_strided_slice %64 {offsets = [32, 0], sizes = [2, 256], strides = [1, 1]} : vector<72x256xf32> to vector<2x256xf32>
    %c16_88 = arith.constant 16 : index
    %c256_89 = arith.constant 256 : index
    %86 = vector.load %arg24[%c16_88, %c256_89] : memref<32x1024xf32, #tpu.memory_space<vmem>>, vector<2x256xf32>
    tpu.vector_store %arg24[%c16_88, %c256_89], %85 {strides = array<i32>} : memref<32x1024xf32, #tpu.memory_space<vmem>>, vector<2x256xf32>,
    %87 = vector.extract_strided_slice %64 {offsets = [48, 0], sizes = [2, 256], strides = [1, 1]} : vector<72x256xf32> to vector<2x256xf32>
    %c16_90 = arith.constant 16 : index
    %c512_91 = arith.constant 512 : index
    %88 = vector.load %arg24[%c16_90, %c512_91] : memref<32x1024xf32, #tpu.memory_space<vmem>>, vector<2x256xf32>
    tpu.vector_store %arg24[%c16_90, %c512_91], %87 {strides = array<i32>} : memref<32x1024xf32, #tpu.memory_space<vmem>>, vector<2x256xf32>,
    %89 = vector.extract_strided_slice %64 {offsets = [56, 0], sizes = [2, 256], strides = [1, 1]} : vector<72x256xf32> to vector<2x256xf32>
    %c16_92 = arith.constant 16 : index
    %c768_93 = arith.constant 768 : index
    %90 = vector.load %arg24[%c16_92, %c768_93] : memref<32x1024xf32, #tpu.memory_space<vmem>>, vector<2x256xf32>
    tpu.vector_store %arg24[%c16_92, %c768_93], %89 {strides = array<i32>} : memref<32x1024xf32, #tpu.memory_space<vmem>>, vector<2x256xf32>,
    %91 = vector.extract_strided_slice %64 {offsets = [32, 0], sizes = [2, 256], strides = [1, 1]} : vector<72x256xf32> to vector<2x256xf32>
    %c24_94 = arith.constant 24 : index
    %c0_95 = arith.constant 0 : index
    %92 = vector.load %arg24[%c24_94, %c0_95] : memref<32x1024xf32, #tpu.memory_space<vmem>>, vector<2x256xf32>
    tpu.vector_store %arg24[%c24_94, %c0_95], %91 {strides = array<i32>} : memref<32x1024xf32, #tpu.memory_space<vmem>>, vector<2x256xf32>,
    %93 = vector.extract_strided_slice %64 {offsets = [40, 0], sizes = [2, 256], strides = [1, 1]} : vector<72x256xf32> to vector<2x256xf32>
    %c24_96 = arith.constant 24 : index
    %c256_97 = arith.constant 256 : index
    %94 = vector.load %arg24[%c24_96, %c256_97] : memref<32x1024xf32, #tpu.memory_space<vmem>>, vector<2x256xf32>
    tpu.vector_store %arg24[%c24_96, %c256_97], %93 {strides = array<i32>} : memref<32x1024xf32, #tpu.memory_space<vmem>>, vector<2x256xf32>,
    %95 = vector.extract_strided_slice %64 {offsets = [56, 0], sizes = [2, 256], strides = [1, 1]} : vector<72x256xf32> to vector<2x256xf32>
    %c24_98 = arith.constant 24 : index
    %c512_99 = arith.constant 512 : index
    %96 = vector.load %arg24[%c24_98, %c512_99] : memref<32x1024xf32, #tpu.memory_space<vmem>>, vector<2x256xf32>
    tpu.vector_store %arg24[%c24_98, %c512_99], %95 {strides = array<i32>} : memref<32x1024xf32, #tpu.memory_space<vmem>>, vector<2x256xf32>,
    %97 = vector.extract_strided_slice %64 {offsets = [64, 0], sizes = [2, 256], strides = [1, 1]} : vector<72x256xf32> to vector<2x256xf32>
    %c24_100 = arith.constant 24 : index
    %c768_101 = arith.constant 768 : index
    %98 = vector.load %arg24[%c24_100, %c768_101] : memref<32x1024xf32, #tpu.memory_space<vmem>>, vector<2x256xf32>
    tpu.vector_store %arg24[%c24_100, %c768_101], %97 {strides = array<i32>} : memref<32x1024xf32, #tpu.memory_space<vmem>>, vector<2x256xf32>,
    %c0_102 = arith.constant 0 : index
    %c0_103 = arith.constant 0 : index
    %99 = vector.load %arg24[%c0_102, %c0_103] : memref<32x1024xf32, #tpu.memory_space<vmem>>, vector<32x1024xf32>
    %c0_104 = arith.constant 0 : index
    %c0_105 = arith.constant 0 : index
    %100 = vector.load %arg7[%c0_104, %c0_105] : memref<1024x128xf32, #tpu.memory_space<vmem>>, vector<1024x128xf32>
    %cst_106 = arith.constant dense<0.000000e+00> : vector<32x128xf32>
    %101 = tpu.matmul %99, %100, %cst_106 {dimension_numbers = #tpu.dot_dimension_numbers<[1], [0], [0], [1], [0, 0, 1, 1], [], []>} : vector<32x1024xf32>, vector<1024x128xf32>, vector<32x128xf32> -> vector<32x128xf32>
    %c0_107 = arith.constant 0 : index
    %c0_108 = arith.constant 0 : index
    %102 = vector.load %arg8[%c0_107, %c0_108] : memref<1x128xf32, #tpu.memory_space<vmem>>, vector<1x128xf32>
    %103 = vector.broadcast %102 : vector<1x128xf32> to vector<32x128xf32>
    %104 = arith.addf %101, %103 : vector<32x128xf32>
    %cst_109 = arith.constant 0.000000e+00 : f32
    %105 = vector.broadcast %cst_109 : f32 to vector<32x128xf32>
    %106 = arith.maximumf %104, %105 : vector<32x128xf32>
    %107 = vector.extract_strided_slice %106 {offsets = [0, 0], sizes = [2, 128], strides = [1, 1]} : vector<32x128xf32> to vector<2x128xf32>
    %108 = vector.extract_strided_slice %106 {offsets = [8, 0], sizes = [2, 128], strides = [1, 1]} : vector<32x128xf32> to vector<2x128xf32>
    %109 = vector.extract_strided_slice %106 {offsets = [16, 0], sizes = [2, 128], strides = [1, 1]} : vector<32x128xf32> to vector<2x128xf32>
    %110 = vector.extract_strided_slice %106 {offsets = [24, 0], sizes = [2, 128], strides = [1, 1]} : vector<32x128xf32> to vector<2x128xf32>
    %111 = tpu.concatenate %107, %108, %109, %110 in 1 : vector<2x128xf32>, vector<2x128xf32>, vector<2x128xf32>, vector<2x128xf32> -> vector<2x512xf32>
    %c0_110 = arith.constant 0 : index
    %c0_111 = arith.constant 0 : index
    %112 = vector.load %arg9[%c0_110, %c0_111] : memref<512x256xf32, #tpu.memory_space<vmem>>, vector<512x256xf32>
    %cst_112 = arith.constant dense<0.000000e+00> : vector<2x256xf32>
    %113 = tpu.matmul %111, %112, %cst_112 {dimension_numbers = #tpu.dot_dimension_numbers<[1], [0], [0], [1], [0, 0, 1, 1], [], []>} : vector<2x512xf32>, vector<512x256xf32>, vector<2x256xf32> -> vector<2x256xf32>
    %c0_113 = arith.constant 0 : index
    %c0_114 = arith.constant 0 : index
    %114 = vector.load %arg10[%c0_113, %c0_114] : memref<1x256xf32, #tpu.memory_space<vmem>>, vector<1x256xf32>
    %115 = vector.broadcast %114 : vector<1x256xf32> to vector<2x256xf32>
    %116 = arith.addf %113, %115 : vector<2x256xf32>
    %cst_115 = arith.constant 0.000000e+00 : f32
    %117 = vector.broadcast %cst_115 : f32 to vector<2x256xf32>
    %118 = arith.maximumf %116, %117 : vector<2x256xf32>
    %c0_116 = arith.constant 0 : index
    %c0_117 = arith.constant 0 : index
    %119 = vector.load %arg11[%c0_116, %c0_117] : memref<256x128xf32, #tpu.memory_space<vmem>>, vector<256x128xf32>
    %cst_118 = arith.constant dense<0.000000e+00> : vector<2x128xf32>
    %120 = tpu.matmul %118, %119, %cst_118 {dimension_numbers = #tpu.dot_dimension_numbers<[1], [0], [0], [1], [0, 0, 1, 1], [], []>} : vector<2x256xf32>, vector<256x128xf32>, vector<2x128xf32> -> vector<2x128xf32>
    %c0_119 = arith.constant 0 : index
    %c0_120 = arith.constant 0 : index
    %121 = vector.load %arg12[%c0_119, %c0_120] : memref<1x128xf32, #tpu.memory_space<vmem>>, vector<1x128xf32>
    %122 = vector.broadcast %121 : vector<1x128xf32> to vector<2x128xf32>
    %123 = arith.addf %120, %122 : vector<2x128xf32>
    %cst_121 = arith.constant 0.000000e+00 : f32
    %124 = vector.broadcast %cst_121 : f32 to vector<2x128xf32>
    %125 = arith.maximumf %123, %124 : vector<2x128xf32>
    %c0_122 = arith.constant 0 : index
    %c0_123 = arith.constant 0 : index
    %126 = vector.load %arg13[%c0_122, %c0_123] : memref<128x128xf32, #tpu.memory_space<vmem>>, vector<128x128xf32>
    %cst_124 = arith.constant dense<0.000000e+00> : vector<2x128xf32>
    %127 = tpu.matmul %125, %126, %cst_124 {dimension_numbers = #tpu.dot_dimension_numbers<[1], [0], [0], [1], [0, 0, 1, 1], [], []>} : vector<2x128xf32>, vector<128x128xf32>, vector<2x128xf32> -> vector<2x128xf32>
    %c0_125 = arith.constant 0 : index
    %c0_126 = arith.constant 0 : index
    %128 = vector.load %arg15[%c0_125, %c0_126] : memref<1x128xf32, #tpu.memory_space<vmem>>, vector<1x128xf32>
    %129 = vector.broadcast %128 : vector<1x128xf32> to vector<2x128xf32>
    %130 = arith.addf %127, %129 : vector<2x128xf32>
    %c0_127 = arith.constant 0 : index
    %c0_128 = arith.constant 0 : index
    %131 = vector.load %arg14[%c0_127, %c0_128] : memref<64x128xf32, #tpu.memory_space<vmem>>, vector<64x128xf32>
    %c0_129 = arith.constant 0 : index
    %c0_130 = arith.constant 0 : index
    %132 = vector.load %arg16[%c0_129, %c0_130] : memref<128x256xf32, #tpu.memory_space<vmem>>, vector<128x256xf32>
    %c0_131 = arith.constant 0 : index
    %c0_132 = arith.constant 0 : index
    %133 = vector.load %arg17[%c0_131, %c0_132] : memref<1x256xf32, #tpu.memory_space<vmem>>, vector<1x256xf32>
    %c0_133 = arith.constant 0 : index
    %c0_134 = arith.constant 0 : index
    %134 = vector.load %arg20[%c0_133, %c0_134] : memref<1x64xf32, #tpu.memory_space<vmem>>, vector<1x64xf32>
    %135 = vector.extract_strided_slice %130 {offsets = [0, 0], sizes = [1, 128], strides = [1, 1]} : vector<2x128xf32> to vector<1x128xf32>
    %cst_135 = arith.constant dense<0.000000e+00> : vector<1x128xf32>
    %136 = tpu.matmul %134, %131, %cst_135 {dimension_numbers = #tpu.dot_dimension_numbers<[1], [0], [0], [1], [0, 0, 1, 1], [], []>} : vector<1x64xf32>, vector<64x128xf32>, vector<1x128xf32> -> vector<1x128xf32>
    %137 = arith.addf %135, %136 : vector<1x128xf32>
    %cst_136 = arith.constant 6.660000e-01 : f32
    %138 = vector.broadcast %cst_136 : f32 to vector<1x128xf32>
    %139 = arith.mulf %138, %137 : vector<1x128xf32>
    %140 = math.tanh %139 : vector<1x128xf32>
    %cst_137 = arith.constant 1.715900e+00 : f32
    %141 = vector.broadcast %cst_137 : f32 to vector<1x128xf32>
    %142 = arith.mulf %141, %140 : vector<1x128xf32>
    %cst_138 = arith.constant dense<0.000000e+00> : vector<1x256xf32>
    %143 = tpu.matmul %142, %132, %cst_138 {dimension_numbers = #tpu.dot_dimension_numbers<[1], [0], [0], [1], [0, 0, 1, 1], [], []>} : vector<1x128xf32>, vector<128x256xf32>, vector<1x256xf32> -> vector<1x256xf32>
    %144 = arith.addf %143, %133 : vector<1x256xf32>
    %145 = vector.extract_strided_slice %144 {offsets = [0, 0], sizes = [1, 64], strides = [1, 1]} : vector<1x256xf32> to vector<1x64xf32>
    %146 = math.tanh %145 : vector<1x64xf32>
    %147 = vector.extract_strided_slice %144 {offsets = [0, 64], sizes = [1, 64], strides = [1, 1]} : vector<1x256xf32> to vector<1x64xf32>
    %148 = math.tanh %147 : vector<1x64xf32>
    %149 = vector.extract_strided_slice %144 {offsets = [0, 128], sizes = [1, 64], strides = [1, 1]} : vector<1x256xf32> to vector<1x64xf32>
    %150 = vector.extract_strided_slice %144 {offsets = [0, 192], sizes = [1, 64], strides = [1, 1]} : vector<1x256xf32> to vector<1x64xf32>
    %151 = arith.addf %149, %150 : vector<1x64xf32>
    %152 = arith.negf %151 : vector<1x64xf32>
    %153 = math.exp %152 : vector<1x64xf32>
    %cst_139 = arith.constant 1.000000e+00 : f32
    %154 = vector.broadcast %cst_139 : f32 to vector<1x64xf32>
    %155 = arith.addf %154, %153 : vector<1x64xf32>
    %156 = arith.divf %154, %155 : vector<1x64xf32>
    %cst_140 = arith.constant 1.000000e+00 : f32
    %157 = vector.broadcast %cst_140 : f32 to vector<1x64xf32>
    %158 = arith.subf %157, %156 : vector<1x64xf32>
    %159 = arith.mulf %146, %158 : vector<1x64xf32>
    %160 = arith.mulf %156, %148 : vector<1x64xf32>
    %161 = arith.addf %159, %160 : vector<1x64xf32>
    %162 = vector.extract_strided_slice %130 {offsets = [1, 0], sizes = [1, 128], strides = [1, 1]} : vector<2x128xf32> to vector<1x128xf32>
    %cst_141 = arith.constant dense<0.000000e+00> : vector<1x128xf32>
    %163 = tpu.matmul %161, %131, %cst_141 {dimension_numbers = #tpu.dot_dimension_numbers<[1], [0], [0], [1], [0, 0, 1, 1], [], []>} : vector<1x64xf32>, vector<64x128xf32>, vector<1x128xf32> -> vector<1x128xf32>
    %164 = arith.addf %162, %163 : vector<1x128xf32>
    %cst_142 = arith.constant 6.660000e-01 : f32
    %165 = vector.broadcast %cst_142 : f32 to vector<1x128xf32>
    %166 = arith.mulf %165, %164 : vector<1x128xf32>
    %167 = math.tanh %166 : vector<1x128xf32>
    %cst_143 = arith.constant 1.715900e+00 : f32
    %168 = vector.broadcast %cst_143 : f32 to vector<1x128xf32>
    %169 = arith.mulf %168, %167 : vector<1x128xf32>
    %cst_144 = arith.constant dense<0.000000e+00> : vector<1x256xf32>
    %170 = tpu.matmul %169, %132, %cst_144 {dimension_numbers = #tpu.dot_dimension_numbers<[1], [0], [0], [1], [0, 0, 1, 1], [], []>} : vector<1x128xf32>, vector<128x256xf32>, vector<1x256xf32> -> vector<1x256xf32>
    %171 = arith.addf %170, %133 : vector<1x256xf32>
    %172 = vector.extract_strided_slice %171 {offsets = [0, 0], sizes = [1, 64], strides = [1, 1]} : vector<1x256xf32> to vector<1x64xf32>
    %173 = math.tanh %172 : vector<1x64xf32>
    %174 = vector.extract_strided_slice %171 {offsets = [0, 64], sizes = [1, 64], strides = [1, 1]} : vector<1x256xf32> to vector<1x64xf32>
    %175 = math.tanh %174 : vector<1x64xf32>
    %176 = vector.extract_strided_slice %171 {offsets = [0, 128], sizes = [1, 64], strides = [1, 1]} : vector<1x256xf32> to vector<1x64xf32>
    %177 = vector.extract_strided_slice %171 {offsets = [0, 192], sizes = [1, 64], strides = [1, 1]} : vector<1x256xf32> to vector<1x64xf32>
    %178 = arith.addf %176, %177 : vector<1x64xf32>
    %179 = arith.negf %178 : vector<1x64xf32>
    %180 = math.exp %179 : vector<1x64xf32>
    %cst_145 = arith.constant 1.000000e+00 : f32
    %181 = vector.broadcast %cst_145 : f32 to vector<1x64xf32>
    %182 = arith.addf %181, %180 : vector<1x64xf32>
    %183 = arith.divf %181, %182 : vector<1x64xf32>
    %cst_146 = arith.constant 1.000000e+00 : f32
    %184 = vector.broadcast %cst_146 : f32 to vector<1x64xf32>
    %185 = arith.subf %184, %183 : vector<1x64xf32>
    %186 = arith.mulf %173, %185 : vector<1x64xf32>
    %187 = arith.mulf %183, %175 : vector<1x64xf32>
    %188 = arith.addf %186, %187 : vector<1x64xf32>
    %c0_147 = arith.constant 0 : index
    %c0_148 = arith.constant 0 : index
    %189 = vector.load %arg22[%c0_147, %c0_148] : memref<1x64xf32, #tpu.memory_space<vmem>>, vector<1x64xf32>
    tpu.vector_store %arg22[%c0_147, %c0_148], %188 {strides = array<i32>} : memref<1x64xf32, #tpu.memory_space<vmem>>, vector<1x64xf32>,
    %190 = tpu.concatenate %161, %188 in 0 : vector<1x64xf32>, vector<1x64xf32> -> vector<2x64xf32>
    %c0_149 = arith.constant 0 : index
    %c0_150 = arith.constant 0 : index
    %191 = vector.load %arg18[%c0_149, %c0_150] : memref<64x6xf32, #tpu.memory_space<vmem>>, vector<64x6xf32>
    %cst_151 = arith.constant dense<0.000000e+00> : vector<2x6xf32>
    %192 = tpu.matmul %190, %191, %cst_151 {dimension_numbers = #tpu.dot_dimension_numbers<[1], [0], [0], [1], [0, 0, 1, 1], [], []>} : vector<2x64xf32>, vector<64x6xf32>, vector<2x6xf32> -> vector<2x6xf32>
    %c0_152 = arith.constant 0 : index
    %c0_153 = arith.constant 0 : index
    %193 = vector.load %arg19[%c0_152, %c0_153] : memref<1x6xf32, #tpu.memory_space<vmem>>, vector<1x6xf32>
    %194 = vector.broadcast %193 : vector<1x6xf32> to vector<2x6xf32>
    %195 = arith.addf %192, %194 : vector<2x6xf32>
    %196 = math.tanh %195 : vector<2x6xf32>
    %cst_154 = arith.constant 1.000000e+00 : f32
    %197 = vector.broadcast %cst_154 : f32 to vector<2x6xf32>
    %198 = arith.addf %196, %197 : vector<2x6xf32>
    %cst_155 = arith.constant 4.000000e+00 : f32
    %199 = vector.broadcast %cst_155 : f32 to vector<2x6xf32>
    %200 = arith.mulf %199, %198 : vector<2x6xf32>
    %cst_156 = arith.constant 5.000000e-01 : f32
    %201 = vector.broadcast %cst_156 : f32 to vector<2x6xf32>
    %202 = arith.mulf %200, %201 : vector<2x6xf32>
    %cst_157 = arith.constant -2.000000e+00 : f32
    %203 = vector.broadcast %cst_157 : f32 to vector<2x6xf32>
    %204 = arith.addf %202, %203 : vector<2x6xf32>
    %c0_158 = arith.constant 0 : index
    %c0_159 = arith.constant 0 : index
    %205 = vector.load %arg21[%c0_158, %c0_159] : memref<2x6xf32, #tpu.memory_space<vmem>>, vector<2x6xf32>
    tpu.vector_store %arg21[%c0_158, %c0_159], %204 {strides = array<i32>} : memref<2x6xf32, #tpu.memory_space<vmem>>, vector<2x6xf32>,
    return
  }
  func.func @transform_0(%arg0: i32) -> (i32, i32) {
    %c0_i32 = arith.constant 0 : i32
    %c0_i32_0 = arith.constant 0 : i32
    %c0_i32_1 = arith.constant 0 : i32
    return %c0_i32, %c0_i32_0 : i32, i32
  }
  func.func @transform_1(%arg0: i32) -> (i32, i32) {
    %c0_i32 = arith.constant 0 : i32
    %c0_i32_0 = arith.constant 0 : i32
    %c0_i32_1 = arith.constant 0 : i32
    return %c0_i32, %c0_i32_0 : i32, i32
  }
  func.func @transform_2(%arg0: i32) -> (i32, i32) {
    %c0_i32 = arith.constant 0 : i32
    %c0_i32_0 = arith.constant 0 : i32
    %c0_i32_1 = arith.constant 0 : i32
    return %c0_i32, %c0_i32_0 : i32, i32
  }
  func.func @transform_3(%arg0: i32) -> (i32, i32) {
    %c0_i32 = arith.constant 0 : i32
    %c0_i32_0 = arith.constant 0 : i32
    %c0_i32_1 = arith.constant 0 : i32
    return %c0_i32, %c0_i32_0 : i32, i32
  }
  func.func @transform_4(%arg0: i32) -> (i32, i32) {
    %c0_i32 = arith.constant 0 : i32
    %c0_i32_0 = arith.constant 0 : i32
    %c0_i32_1 = arith.constant 0 : i32
    return %c0_i32, %c0_i32_0 : i32, i32
  }
  func.func @transform_5(%arg0: i32) -> (i32, i32) {
    %c0_i32 = arith.constant 0 : i32
    %c0_i32_0 = arith.constant 0 : i32
    %c0_i32_1 = arith.constant 0 : i32
    return %c0_i32, %c0_i32_0 : i32, i32
  }
  func.func @transform_6(%arg0: i32) -> (i32, i32) {
    %c0_i32 = arith.constant 0 : i32
    %c0_i32_0 = arith.constant 0 : i32
    %c0_i32_1 = arith.constant 0 : i32
    return %c0_i32, %c0_i32_0 : i32, i32
  }
  func.func @transform_7(%arg0: i32) -> (i32, i32) {
    %c0_i32 = arith.constant 0 : i32
    %c0_i32_0 = arith.constant 0 : i32
    %c0_i32_1 = arith.constant 0 : i32
    return %c0_i32, %c0_i32_0 : i32, i32
  }
  func.func @transform_8(%arg0: i32) -> (i32, i32) {
    %c0_i32 = arith.constant 0 : i32
    %c0_i32_0 = arith.constant 0 : i32
    %c0_i32_1 = arith.constant 0 : i32
    return %c0_i32, %c0_i32_0 : i32, i32
  }
  func.func @transform_9(%arg0: i32) -> (i32, i32) {
    %c0_i32 = arith.constant 0 : i32
    %c0_i32_0 = arith.constant 0 : i32
    %c0_i32_1 = arith.constant 0 : i32
    return %c0_i32, %c0_i32_0 : i32, i32
  }
  func.func @transform_10(%arg0: i32) -> (i32, i32) {
    %c0_i32 = arith.constant 0 : i32
    %c0_i32_0 = arith.constant 0 : i32
    %c0_i32_1 = arith.constant 0 : i32
    return %c0_i32, %c0_i32_0 : i32, i32
  }
  func.func @transform_11(%arg0: i32) -> (i32, i32) {
    %c0_i32 = arith.constant 0 : i32
    %c0_i32_0 = arith.constant 0 : i32
    %c0_i32_1 = arith.constant 0 : i32
    return %c0_i32, %c0_i32_0 : i32, i32
  }
  func.func @transform_12(%arg0: i32) -> (i32, i32) {
    %c0_i32 = arith.constant 0 : i32
    %c0_i32_0 = arith.constant 0 : i32
    %c0_i32_1 = arith.constant 0 : i32
    return %c0_i32, %c0_i32_0 : i32, i32
  }
  func.func @transform_13(%arg0: i32) -> (i32, i32) {
    %c0_i32 = arith.constant 0 : i32
    %c0_i32_0 = arith.constant 0 : i32
    %c0_i32_1 = arith.constant 0 : i32
    return %c0_i32, %c0_i32_0 : i32, i32
  }
  func.func @transform_14(%arg0: i32) -> (i32, i32) {
    %c0_i32 = arith.constant 0 : i32
    %c0_i32_0 = arith.constant 0 : i32
    %c0_i32_1 = arith.constant 0 : i32
    return %c0_i32, %c0_i32_0 : i32, i32
  }
  func.func @transform_15(%arg0: i32) -> (i32, i32) {
    %c0_i32 = arith.constant 0 : i32
    %c0_i32_0 = arith.constant 0 : i32
    %c0_i32_1 = arith.constant 0 : i32
    return %c0_i32, %c0_i32_0 : i32, i32
  }
  func.func @transform_16(%arg0: i32) -> (i32, i32) {
    %c0_i32 = arith.constant 0 : i32
    %c0_i32_0 = arith.constant 0 : i32
    %c0_i32_1 = arith.constant 0 : i32
    return %c0_i32, %c0_i32_0 : i32, i32
  }
  func.func @transform_17(%arg0: i32) -> (i32, i32) {
    %c0_i32 = arith.constant 0 : i32
    %c0_i32_0 = arith.constant 0 : i32
    %c0_i32_1 = arith.constant 0 : i32
    return %c0_i32, %c0_i32_0 : i32, i32
  }
  func.func @transform_18(%arg0: i32) -> (i32, i32) {
    %c0_i32 = arith.constant 0 : i32
    %c0_i32_0 = arith.constant 0 : i32
    %c0_i32_1 = arith.constant 0 : i32
    return %c0_i32, %c0_i32_0 : i32, i32
  }
  func.func @transform_19(%arg0: i32) -> (i32, i32) {
    %c0_i32 = arith.constant 0 : i32
    %c0_i32_0 = arith.constant 0 : i32
    %c0_i32_1 = arith.constant 0 : i32
    return %c0_i32, %c0_i32_0 : i32, i32
  }
  func.func @transform_20(%arg0: i32) -> (i32, i32) {
    %c0_i32 = arith.constant 0 : i32
    %c0_i32_0 = arith.constant 0 : i32
    %c0_i32_1 = arith.constant 0 : i32
    return %c0_i32, %c0_i32_0 : i32, i32
  }
  func.func @transform_21(%arg0: i32) -> (i32, i32) {
    %c0_i32 = arith.constant 0 : i32
    %c0_i32_0 = arith.constant 0 : i32
    %c0_i32_1 = arith.constant 0 : i32
    return %c0_i32, %c0_i32_0 : i32, i32
  }
}

</mosaic_0001>

<llo_original>
// kernel: decoder_forward.1
$region0: #{decoder_forward.1}
  #allocation0 [shape = 'u32[]', space=smem, size = 0x4, offset = 0x4, fixed_abs, tag = 'smem constant byte address 0x4 - core index']
  #allocation1 [shape = 'u32[72,128]{1,0:T(1,128)}', space=vmem, size = 0x9000, scoped, tag = 'internal scratch']
  #allocation2 [shape = 'f32[72,48]{1,0:T(8,128)}', space=vmem, size = 0x9000, scoped, tag = 'scratch operand']
  #allocation3 [shape = 'f32[32,1024]{1,0:T(8,128)}', space=vmem, size = 0x20000, scoped, tag = 'scratch operand']
  %s0 = inlined_call_operand.vmem [shape: f32[8,4], index: 0, kind: input, shape index: {}]
  %s1 = inlined_call_operand.vmem [shape: f32[2,14], index: 1, kind: input, shape index: {}]
  %s2 = inlined_call_operand.vmem [shape: f32[14,8], index: 2, kind: input, shape index: {}]
  %s3 = inlined_call_operand.vmem [shape: f32[1,8], index: 3, kind: input, shape index: {}]
  %s4 = inlined_call_operand.vmem [shape: f32[48,256], index: 4, kind: input, shape index: {}]
  %s5 = inlined_call_operand.vmem [shape: f32[1,256], index: 5, kind: input, shape index: {}]
  %s6 = inlined_call_operand.vmem [shape: f32[1024,128], index: 6, kind: input, shape index: {}]
  %s7 = inlined_call_operand.vmem [shape: f32[1,128], index: 7, kind: input, shape index: {}]
  %s8 = inlined_call_operand.vmem [shape: f32[512,256], index: 8, kind: input, shape index: {}]
  %s9 = inlined_call_operand.vmem [shape: f32[1,256], index: 9, kind: input, shape index: {}]
  %s10 = inlined_call_operand.vmem [shape: f32[256,128], index: 10, kind: input, shape index: {}]
  %s11 = inlined_call_operand.vmem [shape: f32[1,128], index: 11, kind: input, shape index: {}]
  %s12 = inlined_call_operand.vmem [shape: f32[128,128], index: 12, kind: input, shape index: {}]
  %s13 = inlined_call_operand.vmem [shape: f32[64,128], index: 13, kind: input, shape index: {}]
  %s14 = inlined_call_operand.vmem [shape: f32[1,128], index: 14, kind: input, shape index: {}]
  %s15 = inlined_call_operand.vmem [shape: f32[128,256], index: 15, kind: input, shape index: {}]
  %s16 = inlined_call_operand.vmem [shape: f32[1,256], index: 16, kind: input, shape index: {}]
  %s17 = inlined_call_operand.vmem [shape: f32[64,6], index: 17, kind: input, shape index: {}]
  %s18 = inlined_call_operand.vmem [shape: f32[1,6], index: 18, kind: input, shape index: {}]
  %s19 = inlined_call_operand.vmem [shape: f32[1,64], index: 19, kind: input, shape index: {}]
  %s20 = inlined_call_operand.hbm [shape: f32[2,6], index: 20, kind: output, shape index: {0}]
  %s21 = inlined_call_operand.hbm [shape: f32[1,64], index: 21, kind: output, shape index: {1}]
  %22 = xla_tuple %s20, %s21
  %s23 = sld [smem:[#allocation0]]
  $region98: #{decoder_forward.1} parent=0
    _
  %s25 = ssub.s32 1, %s23
  %s26 = scalar_select 0, %s25, %s23
  $region1: #{decoder_forward.1} parent=0
    #allocation4 [shape = 'u8[1024]{0}', space=vmem, size = 0x400, scoped, tag = 'output window, operand 0, single buffered']
    #allocation5 [shape = 's32[1]{0}', space=sflag, size = 0x4, scoped, tag = 'scoped memory for decoder_forward.1']
    #allocation6 [shape = 'u8[512]{0}', space=vmem, size = 0x400, scoped, tag = 'output window, operand 1, single buffered']
    #allocation7 [shape = 's32[1]{0}', space=sflag, size = 0x4, scoped, tag = 'scoped memory for decoder_forward.1']
    %27 = vsyncpa [#allocation5], 0
    %28 = vsyncpa [#allocation7], 0
    // Predicated region
    $region2: #{decoder_forward.1} parent=1 // pred_check
      _
    $region3: #{decoder_forward.1} parent=1 // pred_check_branch
      %30 = sbr.rel (0) target = $region5
    $region4: #{decoder_forward.1} parent=1 // pred_region
      _
    $region5: #{decoder_forward.1} parent=1 // pred_fallthru
      _
    // Predicated region
    $region6: #{decoder_forward.1} parent=1 // pred_check
      _
    $region7: #{decoder_forward.1} parent=1 // pred_check_branch
      %32 = sbr.rel (0) target = $region9
    $region8: #{decoder_forward.1} parent=1 // pred_region
      _
    $region9: #{decoder_forward.1} parent=1 // pred_fallthru
      _
    // Predicated region
    $region10: #{decoder_forward.1} parent=1 // pred_check
      _
    $region11: #{decoder_forward.1} parent=1 // pred_check_branch
      %34 = sbr.rel (0) target = $region13
    $region12: #{decoder_forward.1} parent=1 // pred_region
      _
    $region13: #{decoder_forward.1} parent=1 // pred_fallthru
      _
    // Predicated region
    $region14: #{decoder_forward.1} parent=1 // pred_check
      _
    $region15: #{decoder_forward.1} parent=1 // pred_check_branch
      %36 = sbr.rel (0) target = $region17
    $region16: #{decoder_forward.1} parent=1 // pred_region
      _
    $region17: #{decoder_forward.1} parent=1 // pred_fallthru
      _
    // Predicated region
    $region18: #{decoder_forward.1} parent=1 // pred_check
      _
    $region19: #{decoder_forward.1} parent=1 // pred_check_branch
      %38 = sbr.rel (0) target = $region21
    $region20: #{decoder_forward.1} parent=1 // pred_region
      _
    $region21: #{decoder_forward.1} parent=1 // pred_fallthru
      _
    // Predicated region
    $region22: #{decoder_forward.1} parent=1 // pred_check
      _
    $region23: #{decoder_forward.1} parent=1 // pred_check_branch
      %40 = sbr.rel (0) target = $region25
    $region24: #{decoder_forward.1} parent=1 // pred_region
      _
    $region25: #{decoder_forward.1} parent=1 // pred_fallthru
      _
    // Predicated region
    $region26: #{decoder_forward.1} parent=1 // pred_check
      _
    $region27: #{decoder_forward.1} parent=1 // pred_check_branch
      %42 = sbr.rel (0) target = $region29
    $region28: #{decoder_forward.1} parent=1 // pred_region
      _
    $region29: #{decoder_forward.1} parent=1 // pred_fallthru
      _
    // Predicated region
    $region30: #{decoder_forward.1} parent=1 // pred_check
      _
    $region31: #{decoder_forward.1} parent=1 // pred_check_branch
      %44 = sbr.rel (0) target = $region33
    $region32: #{decoder_forward.1} parent=1 // pred_region
      _
    $region33: #{decoder_forward.1} parent=1 // pred_fallthru
      _
    // Predicated region
    $region34: #{decoder_forward.1} parent=1 // pred_check
      _
    $region35: #{decoder_forward.1} parent=1 // pred_check_branch
      %46 = sbr.rel (0) target = $region37
    $region36: #{decoder_forward.1} parent=1 // pred_region
      _
    $region37: #{decoder_forward.1} parent=1 // pred_fallthru
      _
    // Predicated region
    $region38: #{decoder_forward.1} parent=1 // pred_check
      _
    $region39: #{decoder_forward.1} parent=1 // pred_check_branch
      %48 = sbr.rel (0) target = $region41
    $region40: #{decoder_forward.1} parent=1 // pred_region
      _
    $region41: #{decoder_forward.1} parent=1 // pred_fallthru
      _
    // Predicated region
    $region42: #{decoder_forward.1} parent=1 // pred_check
      _
    $region43: #{decoder_forward.1} parent=1 // pred_check_branch
      %50 = sbr.rel (0) target = $region45
    $region44: #{decoder_forward.1} parent=1 // pred_region
      _
    $region45: #{decoder_forward.1} parent=1 // pred_fallthru
      _
    // Predicated region
    $region46: #{decoder_forward.1} parent=1 // pred_check
      _
    $region47: #{decoder_forward.1} parent=1 // pred_check_branch
      %52 = sbr.rel (0) target = $region49
    $region48: #{decoder_forward.1} parent=1 // pred_region
      _
    $region49: #{decoder_forward.1} parent=1 // pred_fallthru
      _
    // Predicated region
    $region50: #{decoder_forward.1} parent=1 // pred_check
      _
    $region51: #{decoder_forward.1} parent=1 // pred_check_branch
      %54 = sbr.rel (0) target = $region53
    $region52: #{decoder_forward.1} parent=1 // pred_region
      _
    $region53: #{decoder_forward.1} parent=1 // pred_fallthru
      _
    // Predicated region
    $region54: #{decoder_forward.1} parent=1 // pred_check
      _
    $region55: #{decoder_forward.1} parent=1 // pred_check_branch
      %56 = sbr.rel (0) target = $region57
    $region56: #{decoder_forward.1} parent=1 // pred_region
      _
    $region57: #{decoder_forward.1} parent=1 // pred_fallthru
      _
    // Predicated region
    $region58: #{decoder_forward.1} parent=1 // pred_check
      _
    $region59: #{decoder_forward.1} parent=1 // pred_check_branch
      %58 = sbr.rel (0) target = $region61
    $region60: #{decoder_forward.1} parent=1 // pred_region
      _
    $region61: #{decoder_forward.1} parent=1 // pred_fallthru
      _
    // Predicated region
    $region62: #{decoder_forward.1} parent=1 // pred_check
      _
    $region63: #{decoder_forward.1} parent=1 // pred_check_branch
      %60 = sbr.rel (0) target = $region65
    $region64: #{decoder_forward.1} parent=1 // pred_region
      _
    $region65: #{decoder_forward.1} parent=1 // pred_fallthru
      _
    // Predicated region
    $region66: #{decoder_forward.1} parent=1 // pred_check
      _
    $region67: #{decoder_forward.1} parent=1 // pred_check_branch
      %62 = sbr.rel (0) target = $region69
    $region68: #{decoder_forward.1} parent=1 // pred_region
      _
    $region69: #{decoder_forward.1} parent=1 // pred_fallthru
      _
    // Predicated region
    $region70: #{decoder_forward.1} parent=1 // pred_check
      _
    $region71: #{decoder_forward.1} parent=1 // pred_check_branch
      %64 = sbr.rel (0) target = $region73
    $region72: #{decoder_forward.1} parent=1 // pred_region
      _
    $region73: #{decoder_forward.1} parent=1 // pred_fallthru
      _
    // Predicated region
    $region74: #{decoder_forward.1} parent=1 // pred_check
      _
    $region75: #{decoder_forward.1} parent=1 // pred_check_branch
      %66 = sbr.rel (0) target = $region77
    $region76: #{decoder_forward.1} parent=1 // pred_region
      _
    $region77: #{decoder_forward.1} parent=1 // pred_fallthru
      _
    // Predicated region
    $region78: #{decoder_forward.1} parent=1 // pred_check
      _
    $region79: #{decoder_forward.1} parent=1 // pred_check_branch
      %68 = sbr.rel (0) target = $region81
    $region80: #{decoder_forward.1} parent=1 // pred_region
      _
    $region81: #{decoder_forward.1} parent=1 // pred_fallthru
      _
    %v69 = vld [vmem:[%s1] sm:$0x3]
    %v70 = vld [vmem:[%s2] sm:$0xff]
    %v71 = vld [vmem:[%s2 + $0x8] sm:$0x3f]
    %v72 = vld [vmem:[%s3] sm:$0x1]
    %v74 = vperm.slane %v72, 0
    %vm76 = vcmask 113664
    %v78 = vsel %vm76, %v69, 0
    %vm80 = vcmask 1045504
    %v82 = vsel %vm80, %v71, 0
    %84 = vmatpush.msra.mxu0 0.0
    %85 = vmatpush.msra.mxu0 0.0
    %86 = vmatpush.msra.mxu0 0.0
    %87 = vmatpush.msra.mxu0 0.0
    %88 = vmatpush.msra.mxu0 0.0
    %89 = vmatpush.msra.mxu0 0.0
    %90 = vmatpush.msra.mxu0 0.0
    %91 = vmatpush.msra.mxu0 0.0
    %92 = vmatpush.msra.mxu0 0.0
    %93 = vmatpush.msra.mxu0 0.0
    %94 = vmatpush.msra.mxu0 0.0
    %95 = vmatpush.msra.mxu0 0.0
    %96 = vmatpush.msra.mxu0 0.0
    %97 = vmatpush.msra.mxu0 0.0
    %98 = vmatpush.msra.mxu0 %v82
    %99 = vmatpush.msra.mxu0 %v70
    %100 = vmatmul.f32.gmra.mxu0 %v78
    %v101 = vpop.f32.mrf.mxu0
    %v102 = vadd.f32 %v74, %v101
    %103 = vdwg.mxu0
    %v104 = vld [vmem:[%s0] sm:$0xff]
    %vm105 = vcmask 392192
    %106 = vst.msk [vmem:[#allocation2] sm:$0xff] %vm105, 0.0
    %107 = vst.msk [vmem:[#allocation2 + $0x8] sm:$0xff] %vm105, 0.0
    %108 = vst.msk [vmem:[#allocation2 + $0x10] sm:$0xff] %vm105, 0.0
    %109 = vst.msk [vmem:[#allocation2 + $0x18] sm:$0xff] %vm105, 0.0
    %110 = vst.msk [vmem:[#allocation2 + $0x20] sm:$0xff] %vm105, 0.0
    %111 = vst.msk [vmem:[#allocation2 + $0x28] sm:$0xff] %vm105, 0.0
    %112 = vst.msk [vmem:[#allocation2 + $0x30] sm:$0xff] %vm105, 0.0
    %113 = vst.msk [vmem:[#allocation2 + $0x38] sm:$0xff] %vm105, 0.0
    %114 = vst.msk [vmem:[#allocation2 + $0x40] sm:$0xff] %vm105, 0.0
    %116 = vrot.lane.b32.xlu0 %v104, 36
    %v117 = vpop.permute.xlu0 %116
    %vm119 = vcmask 320800
    %120 = vst.msk [vmem:[#allocation2] sm:$0x3] %vm119, %v117
    %122 = vrot.lane.b32.xlu0 %v102, 40
    %v123 = vpop.permute.xlu0 %122
    %vm125 = vcmask 386368
    %126 = vst.msk [vmem:[#allocation2] sm:$0x3] %vm125, %v123
    %127 = vrot.lane.b32.xlu0 %v104, 24
    %v128 = vpop.permute.xlu0 %127
    %vm130 = vcmask 222400
    %131 = vst.msk [vmem:[#allocation2 + $0x8] sm:$0x3] %vm130, %v128
    %132 = vrot.lane.b32.xlu0 %v102, 28
    %v133 = vpop.permute.xlu0 %132
    %vm135 = vcmask 287968
    %136 = vst.msk [vmem:[#allocation2 + $0x8] sm:$0x3] %vm135, %v133
    %vm137 = vcmask 322850
    %138 = vst.msk [vmem:[#allocation2 + $0x6] sm:$0xc] %vm137, %v117
    %139 = vst.msk [vmem:[#allocation2 + $0x8] sm:$0x3] %vm125, %v123
    %vm140 = vcmask 224450
    %141 = vst.msk [vmem:[#allocation2 + $0xe] sm:$0xc] %vm140, %v128
    %142 = vst.msk [vmem:[#allocation2 + $0x10] sm:$0x3] %vm135, %v133
    %143 = vrot.lane.b32.xlu0 %v104, 12
    %v144 = vpop.permute.xlu0 %143
    %vm146 = vcmask 124000
    %147 = vst.msk [vmem:[#allocation2 + $0x18] sm:$0x3] %vm146, %v144
    %148 = vrot.lane.b32.xlu0 %v102, 16
    %v149 = vpop.permute.xlu0 %148
    %vm151 = vcmask 189568
    %152 = vst.msk [vmem:[#allocation2 + $0x18] sm:$0x3] %vm151, %v149
    %vm153 = vcmask 324900
    %154 = vst.msk [vmem:[#allocation2 + $0x14] sm:$0x30] %vm153, %v117
    %155 = vst.msk [vmem:[#allocation2 + $0x18] sm:$0x3] %vm125, %v123
    %vm156 = vcmask 25600
    %157 = vst.msk [vmem:[#allocation2 + $0x20] sm:$0x3] %vm156, %v104
    %158 = vrot.lane.b32.xlu0 %v102, 4
    %v159 = vpop.permute.xlu0 %158
    %vm161 = vcmask 91168
    %162 = vst.msk [vmem:[#allocation2 + $0x20] sm:$0x3] %vm161, %v159
    %vm163 = vcmask 126050
    %164 = vst.msk [vmem:[#allocation2 + $0x1e] sm:$0xc] %vm163, %v144
    %165 = vst.msk [vmem:[#allocation2 + $0x20] sm:$0x3] %vm151, %v149
    %vm166 = vcmask 226500
    %167 = vst.msk [vmem:[#allocation2 + $0x1c] sm:$0x30] %vm166, %v128
    %168 = vst.msk [vmem:[#allocation2 + $0x20] sm:$0x3] %vm135, %v133
    %vm169 = vcmask 326950
    %170 = vst.msk [vmem:[#allocation2 + $0x1a] sm:$0xc0] %vm169, %v117
    %171 = vst.msk [vmem:[#allocation2 + $0x20] sm:$0x3] %vm125, %v123
    %vm172 = vcmask 27650
    %173 = vst.msk [vmem:[#allocation2 + $0x26] sm:$0xc] %vm172, %v104
    %174 = vst.msk [vmem:[#allocation2 + $0x28] sm:$0x3] %vm161, %v159
    %vm175 = vcmask 228550
    %176 = vst.msk [vmem:[#allocation2 + $0x22] sm:$0xc0] %vm175, %v128
    %177 = vst.msk [vmem:[#allocation2 + $0x28] sm:$0x3] %vm135, %v133
    %vm178 = vcmask 128100
    %179 = vst.msk [vmem:[#allocation2 + $0x2c] sm:$0x30] %vm178, %v144
    %180 = vst.msk [vmem:[#allocation2 + $0x30] sm:$0x3] %vm151, %v149
    %vm181 = vcmask 29700
    %182 = vst.msk [vmem:[#allocation2 + $0x34] sm:$0x30] %vm181, %v104
    %183 = vst.msk [vmem:[#allocation2 + $0x38] sm:$0x3] %vm161, %v159
    %vm184 = vcmask 130150
    %185 = vst.msk [vmem:[#allocation2 + $0x32] sm:$0xc0] %vm184, %v144
    %186 = vst.msk [vmem:[#allocation2 + $0x38] sm:$0x3] %vm151, %v149
    %vm187 = vcmask 31750
    %188 = vst.msk [vmem:[#allocation2 + $0x3a] sm:$0xc0] %vm187, %v104
    %189 = vst.msk [vmem:[#allocation2 + $0x40] sm:$0x3] %vm161, %v159
    %v190 = vld [vmem:[#allocation2] sm:$0xff]
    %v191 = vld [vmem:[#allocation2 + $0x8] sm:$0xff]
    %v192 = vld [vmem:[#allocation2 + $0x10] sm:$0xff]
    %v193 = vld [vmem:[#allocation2 + $0x18] sm:$0xff]
    %v194 = vld [vmem:[#allocation2 + $0x20] sm:$0xff]
    %v195 = vld [vmem:[#allocation2 + $0x28] sm:$0xff]
    %v196 = vld [vmem:[#allocation2 + $0x30] sm:$0xff]
    %v197 = vld [vmem:[#allocation2 + $0x38] sm:$0xff]
    %v198 = vld [vmem:[#allocation2 + $0x40] sm:$0xff]
    %v199 = vld [vmem:[%s4] sm:$0xff]
    %v200 = vld [vmem:[%s4 + $0x8] sm:$0xff]
    %v201 = vld [vmem:[%s4 + $0x10] sm:$0xff]
    %v202 = vld [vmem:[%s4 + $0x18] sm:$0xff]
    %v203 = vld [vmem:[%s4 + $0x20] sm:$0xff]
    %v204 = vld [vmem:[%s4 + $0x28] sm:$0xff]
    %v205 = vld [vmem:[%s4 + $0x30] sm:$0xff]
    %v206 = vld [vmem:[%s4 + $0x38] sm:$0xff]
    %v207 = vld [vmem:[%s4 + $0x40] sm:$0xff]
    %v208 = vld [vmem:[%s4 + $0x48] sm:$0xff]
    %v209 = vld [vmem:[%s4 + $0x50] sm:$0xff]
    %v210 = vld [vmem:[%s4 + $0x58] sm:$0xff]
    %v211 = vld [vmem:[%s5] sm:$0x3]
    %v213 = vperm.slane %v211, 0
    %v214 = vperm.slane %v211, 1
    %v218 = vsel %vm105, %v190, 0
    %v221 = vsel %vm105, %v191, 0
    %v224 = vsel %vm105, %v192, 0
    %v227 = vsel %vm105, %v193, 0
    %v230 = vsel %vm105, %v194, 0
    %v233 = vsel %vm105, %v195, 0
    %v236 = vsel %vm105, %v196, 0
    %v239 = vsel %vm105, %v197, 0
    %v242 = vsel %vm105, %v198, 0
    %244 = vmatpush.msra.mxu0 0.0
    %245 = vmatpush.msra.mxu0 0.0
    %246 = vmatpush.msra.mxu0 0.0
    %247 = vmatpush.msra.mxu0 0.0
    %248 = vmatpush.msra.mxu0 0.0
    %249 = vmatpush.msra.mxu0 0.0
    %250 = vmatpush.msra.mxu0 0.0
    %251 = vmatpush.msra.mxu0 0.0
    %252 = vmatpush.msra.mxu0 0.0
    %253 = vmatpush.msra.mxu0 0.0
    %254 = vmatpush.msra.mxu0 %v209
    %255 = vmatpush.msra.mxu0 %v207
    %256 = vmatpush.msra.mxu0 %v205
    %257 = vmatpush.msra.mxu0 %v203
    %258 = vmatpush.msra.mxu0 %v201
    %259 = vmatpush.msra.mxu0 %v199
    %260 = vmatmul.f32.gmra.mxu0 %v218
    %v261 = vpop.f32.mrf.mxu0
    %v262 = vadd.f32 %v213, %v261
    %263 = vmatmul.f32.gmra.mxu0 %v221
    %v264 = vpop.f32.mrf.mxu0
    %v265 = vadd.f32 %v213, %v264
    %266 = vmatmul.f32.gmra.mxu0 %v224
    %v267 = vpop.f32.mrf.mxu0
    %v268 = vadd.f32 %v213, %v267
    %269 = vmatmul.f32.gmra.mxu0 %v227
    %v270 = vpop.f32.mrf.mxu0
    %v271 = vadd.f32 %v213, %v270
    %272 = vmatmul.f32.gmra.mxu0 %v230
    %v273 = vpop.f32.mrf.mxu0
    %v274 = vadd.f32 %v213, %v273
    %275 = vmatmul.f32.gmra.mxu0 %v233
    %v276 = vpop.f32.mrf.mxu0
    %v277 = vadd.f32 %v213, %v276
    %278 = vmatmul.f32.gmra.mxu0 %v236
    %v279 = vpop.f32.mrf.mxu0
    %v280 = vadd.f32 %v213, %v279
    %281 = vmatmul.f32.gmra.mxu0 %v239
    %v282 = vpop.f32.mrf.mxu0
    %v283 = vadd.f32 %v213, %v282
    %284 = vmatmul.f32.gmra.mxu0 %v242
    %v285 = vpop.f32.mrf.mxu0
    %v286 = vadd.f32 %v213, %v285
    %287 = vdwg.mxu0
    %288 = vmatpush.msra.mxu0 0.0
    %289 = vmatpush.msra.mxu0 0.0
    %290 = vmatpush.msra.mxu0 0.0
    %291 = vmatpush.msra.mxu0 0.0
    %292 = vmatpush.msra.mxu0 0.0
    %293 = vmatpush.msra.mxu0 0.0
    %294 = vmatpush.msra.mxu0 0.0
    %295 = vmatpush.msra.mxu0 0.0
    %296 = vmatpush.msra.mxu0 0.0
    %297 = vmatpush.msra.mxu0 0.0
    %298 = vmatpush.msra.mxu0 %v210
    %299 = vmatpush.msra.mxu0 %v208
    %300 = vmatpush.msra.mxu0 %v206
    %301 = vmatpush.msra.mxu0 %v204
    %302 = vmatpush.msra.mxu0 %v202
    %303 = vmatpush.msra.mxu0 %v200
    %304 = vmatmul.f32.gmra.mxu0 %v218
    %v305 = vpop.f32.mrf.mxu0
    %v306 = vadd.f32 %v214, %v305
    %307 = vmatmul.f32.gmra.mxu0 %v221
    %v308 = vpop.f32.mrf.mxu0
    %v309 = vadd.f32 %v214, %v308
    %310 = vmatmul.f32.gmra.mxu0 %v224
    %v311 = vpop.f32.mrf.mxu0
    %v312 = vadd.f32 %v214, %v311
    %313 = vmatmul.f32.gmra.mxu0 %v227
    %v314 = vpop.f32.mrf.mxu0
    %v315 = vadd.f32 %v214, %v314
    %316 = vmatmul.f32.gmra.mxu0 %v230
    %v317 = vpop.f32.mrf.mxu0
    %v318 = vadd.f32 %v214, %v317
    %319 = vmatmul.f32.gmra.mxu0 %v233
    %v320 = vpop.f32.mrf.mxu0
    %v321 = vadd.f32 %v214, %v320
    %322 = vmatmul.f32.gmra.mxu0 %v236
    %v323 = vpop.f32.mrf.mxu0
    %v324 = vadd.f32 %v214, %v323
    %325 = vmatmul.f32.gmra.mxu0 %v239
    %v326 = vpop.f32.mrf.mxu0
    %v327 = vadd.f32 %v214, %v326
    %328 = vmatmul.f32.gmra.mxu0 %v242
    %v329 = vpop.f32.mrf.mxu0
    %v330 = vadd.f32 %v214, %v329
    %331 = vdwg.mxu0
    %v332 = vmax.f32 %v262, 0.0
    %v333 = vmax.f32 %v306, 0.0
    %v334 = vmax.f32 %v265, 0.0
    %v335 = vmax.f32 %v309, 0.0
    %v336 = vmax.f32 %v268, 0.0
    %v337 = vmax.f32 %v312, 0.0
    %v338 = vmax.f32 %v271, 0.0
    %v339 = vmax.f32 %v315, 0.0
    %v340 = vmax.f32 %v274, 0.0
    %v341 = vmax.f32 %v318, 0.0
    %v342 = vmax.f32 %v277, 0.0
    %v343 = vmax.f32 %v321, 0.0
    %v344 = vmax.f32 %v280, 0.0
    %v345 = vmax.f32 %v324, 0.0
    %v346 = vmax.f32 %v283, 0.0
    %v347 = vmax.f32 %v327, 0.0
    %v348 = vmax.f32 %v286, 0.0
    %v349 = vmax.f32 %v330, 0.0
    %350 = vst [vmem:[#allocation3] sm:$0xff] 0.0
    %351 = vst [vmem:[#allocation3 + $0x8] sm:$0xff] 0.0
    %352 = vst [vmem:[#allocation3 + $0x10] sm:$0xff] 0.0
    %353 = vst [vmem:[#allocation3 + $0x18] sm:$0xff] 0.0
    %354 = vst [vmem:[#allocation3 + $0x20] sm:$0xff] 0.0
    %355 = vst [vmem:[#allocation3 + $0x28] sm:$0xff] 0.0
    %356 = vst [vmem:[#allocation3 + $0x30] sm:$0xff] 0.0
    %357 = vst [vmem:[#allocation3 + $0x38] sm:$0xff] 0.0
    %358 = vst [vmem:[#allocation3 + $0x40] sm:$0xff] 0.0
    %359 = vst [vmem:[#allocation3 + $0x48] sm:$0xff] 0.0
    %360 = vst [vmem:[#allocation3 + $0x50] sm:$0xff] 0.0
    %361 = vst [vmem:[#allocation3 + $0x58] sm:$0xff] 0.0
    %362 = vst [vmem:[#allocation3 + $0x60] sm:$0xff] 0.0
    %363 = vst [vmem:[#allocation3 + $0x68] sm:$0xff] 0.0
    %364 = vst [vmem:[#allocation3 + $0x70] sm:$0xff] 0.0
    %365 = vst [vmem:[#allocation3 + $0x78] sm:$0xff] 0.0
    %366 = vst [vmem:[#allocation3 + $0x80] sm:$0xff] 0.0
    %367 = vst [vmem:[#allocation3 + $0x88] sm:$0xff] 0.0
    %368 = vst [vmem:[#allocation3 + $0x90] sm:$0xff] 0.0
    %369 = vst [vmem:[#allocation3 + $0x98] sm:$0xff] 0.0
    %370 = vst [vmem:[#allocation3 + $0xa0] sm:$0xff] 0.0
    %371 = vst [vmem:[#allocation3 + $0xa8] sm:$0xff] 0.0
    %372 = vst [vmem:[#allocation3 + $0xb0] sm:$0xff] 0.0
    %373 = vst [vmem:[#allocation3 + $0xb8] sm:$0xff] 0.0
    %374 = vst [vmem:[#allocation3 + $0xc0] sm:$0xff] 0.0
    %375 = vst [vmem:[#allocation3 + $0xc8] sm:$0xff] 0.0
    %376 = vst [vmem:[#allocation3 + $0xd0] sm:$0xff] 0.0
    %377 = vst [vmem:[#allocation3 + $0xd8] sm:$0xff] 0.0
    %378 = vst [vmem:[#allocation3 + $0xe0] sm:$0xff] 0.0
    %379 = vst [vmem:[#allocation3 + $0xe8] sm:$0xff] 0.0
    %380 = vst [vmem:[#allocation3 + $0xf0] sm:$0xff] 0.0
    %381 = vst [vmem:[#allocation3 + $0xf8] sm:$0xff] 0.0
    %382 = vst [vmem:[#allocation3] sm:$0x3] %v332
    %383 = vst [vmem:[#allocation3 + $0x8] sm:$0x3] %v333
    %384 = vst [vmem:[#allocation3 + $0x10] sm:$0x3] %v334
    %385 = vst [vmem:[#allocation3 + $0x18] sm:$0x3] %v335
    %386 = vst [vmem:[#allocation3 + $0x20] sm:$0x3] %v338
    %387 = vst [vmem:[#allocation3 + $0x28] sm:$0x3] %v339
    %388 = vst [vmem:[#allocation3 + $0x30] sm:$0x3] %v340
    %389 = vst [vmem:[#allocation3 + $0x38] sm:$0x3] %v341
    %390 = vst [vmem:[#allocation3 + $0x40] sm:$0x3] %v334
    %391 = vst [vmem:[#allocation3 + $0x48] sm:$0x3] %v335
    %392 = vst [vmem:[#allocation3 + $0x50] sm:$0x3] %v336
    %393 = vst [vmem:[#allocation3 + $0x58] sm:$0x3] %v337
    %394 = vst [vmem:[#allocation3 + $0x60] sm:$0x3] %v340
    %395 = vst [vmem:[#allocation3 + $0x68] sm:$0x3] %v341
    %396 = vst [vmem:[#allocation3 + $0x70] sm:$0x3] %v342
    %397 = vst [vmem:[#allocation3 + $0x78] sm:$0x3] %v343
    %398 = vst [vmem:[#allocation3 + $0x80] sm:$0x3] %v338
    %399 = vst [vmem:[#allocation3 + $0x88] sm:$0x3] %v339
    %400 = vst [vmem:[#allocation3 + $0x90] sm:$0x3] %v340
    %401 = vst [vmem:[#allocation3 + $0x98] sm:$0x3] %v341
    %402 = vst [vmem:[#allocation3 + $0xa0] sm:$0x3] %v344
    %403 = vst [vmem:[#allocation3 + $0xa8] sm:$0x3] %v345
    %404 = vst [vmem:[#allocation3 + $0xb0] sm:$0x3] %v346
    %405 = vst [vmem:[#allocation3 + $0xb8] sm:$0x3] %v347
    %406 = vst [vmem:[#allocation3 + $0xc0] sm:$0x3] %v340
    %407 = vst [vmem:[#allocation3 + $0xc8] sm:$0x3] %v341
    %408 = vst [vmem:[#allocation3 + $0xd0] sm:$0x3] %v342
    %409 = vst [vmem:[#allocation3 + $0xd8] sm:$0x3] %v343
    %410 = vst [vmem:[#allocation3 + $0xe0] sm:$0x3] %v346
    %411 = vst [vmem:[#allocation3 + $0xe8] sm:$0x3] %v347
    %412 = vst [vmem:[#allocation3 + $0xf0] sm:$0x3] %v348
    %413 = vst [vmem:[#allocation3 + $0xf8] sm:$0x3] %v349
    %v414 = vld [vmem:[#allocation3] sm:$0xff]
    %v415 = vld [vmem:[#allocation3 + $0x8] sm:$0xff]
    %v416 = vld [vmem:[#allocation3 + $0x10] sm:$0xff]
    %v417 = vld [vmem:[#allocation3 + $0x18] sm:$0xff]
    %v418 = vld [vmem:[#allocation3 + $0x20] sm:$0xff]
    %v419 = vld [vmem:[#allocation3 + $0x28] sm:$0xff]
    %v420 = vld [vmem:[#allocation3 + $0x30] sm:$0xff]
    %v421 = vld [vmem:[#allocation3 + $0x38] sm:$0xff]
    %v422 = vld [vmem:[#allocation3 + $0x40] sm:$0xff]
    %v423 = vld [vmem:[#allocation3 + $0x48] sm:$0xff]
    %v424 = vld [vmem:[#allocation3 + $0x50] sm:$0xff]
    %v425 = vld [vmem:[#allocation3 + $0x58] sm:$0xff]
    %v426 = vld [vmem:[#allocation3 + $0x60] sm:$0xff]
    %v427 = vld [vmem:[#allocation3 + $0x68] sm:$0xff]
    %v428 = vld [vmem:[#allocation3 + $0x70] sm:$0xff]
    %v429 = vld [vmem:[#allocation3 + $0x78] sm:$0xff]
    %v430 = vld [vmem:[#allocation3 + $0x80] sm:$0xff]
    %v431 = vld [vmem:[#allocation3 + $0x88] sm:$0xff]
    %v432 = vld [vmem:[#allocation3 + $0x90] sm:$0xff]
    %v433 = vld [vmem:[#allocation3 + $0x98] sm:$0xff]
    %v434 = vld [vmem:[#allocation3 + $0xa0] sm:$0xff]
    %v435 = vld [vmem:[#allocation3 + $0xa8] sm:$0xff]
    %v436 = vld [vmem:[#allocation3 + $0xb0] sm:$0xff]
    %v437 = vld [vmem:[#allocation3 + $0xb8] sm:$0xff]
    %v438 = vld [vmem:[#allocation3 + $0xc0] sm:$0xff]
    %v439 = vld [vmem:[#allocation3 + $0xc8] sm:$0xff]
    %v440 = vld [vmem:[#allocation3 + $0xd0] sm:$0xff]
    %v441 = vld [vmem:[#allocation3 + $0xd8] sm:$0xff]
    %v442 = vld [vmem:[#allocation3 + $0xe0] sm:$0xff]
    %v443 = vld [vmem:[#allocation3 + $0xe8] sm:$0xff]
    %v444 = vld [vmem:[#allocation3 + $0xf0] sm:$0xff]
    %v445 = vld [vmem:[#allocation3 + $0xf8] sm:$0xff]
    %v446 = vld [vmem:[%s6] sm:$0xff]
    %v447 = vld [vmem:[%s6 + $0x8] sm:$0xff]
    %v448 = vld [vmem:[%s6 + $0x10] sm:$0xff]
    %v449 = vld [vmem:[%s6 + $0x18] sm:$0xff]
    %v450 = vld [vmem:[%s6 + $0x20] sm:$0xff]
    %v451 = vld [vmem:[%s6 + $0x28] sm:$0xff]
    %v452 = vld [vmem:[%s6 + $0x30] sm:$0xff]
    %v453 = vld [vmem:[%s6 + $0x38] sm:$0xff]
    %v454 = vld [vmem:[%s6 + $0x40] sm:$0xff]
    %v455 = vld [vmem:[%s6 + $0x48] sm:$0xff]
    %v456 = vld [vmem:[%s6 + $0x50] sm:$0xff]
    %v457 = vld [vmem:[%s6 + $0x58] sm:$0xff]
    %v458 = vld [vmem:[%s6 + $0x60] sm:$0xff]
    %v459 = vld [vmem:[%s6 + $0x68] sm:$0xff]
    %v460 = vld [vmem:[%s6 + $0x70] sm:$0xff]
    %v461 = vld [vmem:[%s6 + $0x78] sm:$0xff]
    %v462 = vld [vmem:[%s6 + $0x80] sm:$0xff]
    %v463 = vld [vmem:[%s6 + $0x88] sm:$0xff]
    %v464 = vld [vmem:[%s6 + $0x90] sm:$0xff]
    %v465 = vld [vmem:[%s6 + $0x98] sm:$0xff]
    %v466 = vld [vmem:[%s6 + $0xa0] sm:$0xff]
    %v467 = vld [vmem:[%s6 + $0xa8] sm:$0xff]
    %v468 = vld [vmem:[%s6 + $0xb0] sm:$0xff]
    %v469 = vld [vmem:[%s6 + $0xb8] sm:$0xff]
    %v470 = vld [vmem:[%s6 + $0xc0] sm:$0xff]
    %v471 = vld [vmem:[%s6 + $0xc8] sm:$0xff]
    %v472 = vld [vmem:[%s6 + $0xd0] sm:$0xff]
    %v473 = vld [vmem:[%s6 + $0xd8] sm:$0xff]
    %v474 = vld [vmem:[%s6 + $0xe0] sm:$0xff]
    %v475 = vld [vmem:[%s6 + $0xe8] sm:$0xff]
    %v476 = vld [vmem:[%s6 + $0xf0] sm:$0xff]
    %v477 = vld [vmem:[%s6 + $0xf8] sm:$0xff]
    %v478 = vld [vmem:[%s6 + $0x100] sm:$0xff]
    %v479 = vld [vmem:[%s6 + $0x108] sm:$0xff]
    %v480 = vld [vmem:[%s6 + $0x110] sm:$0xff]
    %v481 = vld [vmem:[%s6 + $0x118] sm:$0xff]
    %v482 = vld [vmem:[%s6 + $0x120] sm:$0xff]
    %v483 = vld [vmem:[%s6 + $0x128] sm:$0xff]
    %v484 = vld [vmem:[%s6 + $0x130] sm:$0xff]
    %v485 = vld [vmem:[%s6 + $0x138] sm:$0xff]
    %v486 = vld [vmem:[%s6 + $0x140] sm:$0xff]
    %v487 = vld [vmem:[%s6 + $0x148] sm:$0xff]
    %v488 = vld [vmem:[%s6 + $0x150] sm:$0xff]
    %v489 = vld [vmem:[%s6 + $0x158] sm:$0xff]
    %v490 = vld [vmem:[%s6 + $0x160] sm:$0xff]
    %v491 = vld [vmem:[%s6 + $0x168] sm:$0xff]
    %v492 = vld [vmem:[%s6 + $0x170] sm:$0xff]
    %v493 = vld [vmem:[%s6 + $0x178] sm:$0xff]
    %v494 = vld [vmem:[%s6 + $0x180] sm:$0xff]
    %v495 = vld [vmem:[%s6 + $0x188] sm:$0xff]
    %v496 = vld [vmem:[%s6 + $0x190] sm:$0xff]
    %v497 = vld [vmem:[%s6 + $0x198] sm:$0xff]
    %v498 = vld [vmem:[%s6 + $0x1a0] sm:$0xff]
    %v499 = vld [vmem:[%s6 + $0x1a8] sm:$0xff]
    %v500 = vld [vmem:[%s6 + $0x1b0] sm:$0xff]
    %v501 = vld [vmem:[%s6 + $0x1b8] sm:$0xff]
    %v502 = vld [vmem:[%s6 + $0x1c0] sm:$0xff]
    %v503 = vld [vmem:[%s6 + $0x1c8] sm:$0xff]
    %v504 = vld [vmem:[%s6 + $0x1d0] sm:$0xff]
    %v505 = vld [vmem:[%s6 + $0x1d8] sm:$0xff]
    %v506 = vld [vmem:[%s6 + $0x1e0] sm:$0xff]
    %v507 = vld [vmem:[%s6 + $0x1e8] sm:$0xff]
    %v508 = vld [vmem:[%s6 + $0x1f0] sm:$0xff]
    %v509 = vld [vmem:[%s6 + $0x1f8] sm:$0xff]
    %v510 = vld [vmem:[%s6 + $0x200] sm:$0xff]
    %v511 = vld [vmem:[%s6 + $0x208] sm:$0xff]
    %v512 = vld [vmem:[%s6 + $0x210] sm:$0xff]
    %v513 = vld [vmem:[%s6 + $0x218] sm:$0xff]
    %v514 = vld [vmem:[%s6 + $0x220] sm:$0xff]
    %v515 = vld [vmem:[%s6 + $0x228] sm:$0xff]
    %v516 = vld [vmem:[%s6 + $0x230] sm:$0xff]
    %v517 = vld [vmem:[%s6 + $0x238] sm:$0xff]
    %v518 = vld [vmem:[%s6 + $0x240] sm:$0xff]
    %v519 = vld [vmem:[%s6 + $0x248] sm:$0xff]
    %v520 = vld [vmem:[%s6 + $0x250] sm:$0xff]
    %v521 = vld [vmem:[%s6 + $0x258] sm:$0xff]
    %v522 = vld [vmem:[%s6 + $0x260] sm:$0xff]
    %v523 = vld [vmem:[%s6 + $0x268] sm:$0xff]
    %v524 = vld [vmem:[%s6 + $0x270] sm:$0xff]
    %v525 = vld [vmem:[%s6 + $0x278] sm:$0xff]
    %v526 = vld [vmem:[%s6 + $0x280] sm:$0xff]
    %v527 = vld [vmem:[%s6 + $0x288] sm:$0xff]
    %v528 = vld [vmem:[%s6 + $0x290] sm:$0xff]
    %v529 = vld [vmem:[%s6 + $0x298] sm:$0xff]
    %v530 = vld [vmem:[%s6 + $0x2a0] sm:$0xff]
    %v531 = vld [vmem:[%s6 + $0x2a8] sm:$0xff]
    %v532 = vld [vmem:[%s6 + $0x2b0] sm:$0xff]
    %v533 = vld [vmem:[%s6 + $0x2b8] sm:$0xff]
    %v534 = vld [vmem:[%s6 + $0x2c0] sm:$0xff]
    %v535 = vld [vmem:[%s6 + $0x2c8] sm:$0xff]
    %v536 = vld [vmem:[%s6 + $0x2d0] sm:$0xff]
    %v537 = vld [vmem:[%s6 + $0x2d8] sm:$0xff]
    %v538 = vld [vmem:[%s6 + $0x2e0] sm:$0xff]
    %v539 = vld [vmem:[%s6 + $0x2e8] sm:$0xff]
    %v540 = vld [vmem:[%s6 + $0x2f0] sm:$0xff]
    %v541 = vld [vmem:[%s6 + $0x2f8] sm:$0xff]
    %v542 = vld [vmem:[%s6 + $0x300] sm:$0xff]
    %v543 = vld [vmem:[%s6 + $0x308] sm:$0xff]
    %v544 = vld [vmem:[%s6 + $0x310] sm:$0xff]
    %v545 = vld [vmem:[%s6 + $0x318] sm:$0xff]
    %v546 = vld [vmem:[%s6 + $0x320] sm:$0xff]
    %v547 = vld [vmem:[%s6 + $0x328] sm:$0xff]
    %v548 = vld [vmem:[%s6 + $0x330] sm:$0xff]
    %v549 = vld [vmem:[%s6 + $0x338] sm:$0xff]
    %v550 = vld [vmem:[%s6 + $0x340] sm:$0xff]
    %v551 = vld [vmem:[%s6 + $0x348] sm:$0xff]
    %v552 = vld [vmem:[%s6 + $0x350] sm:$0xff]
    %v553 = vld [vmem:[%s6 + $0x358] sm:$0xff]
    %v554 = vld [vmem:[%s6 + $0x360] sm:$0xff]
    %v555 = vld [vmem:[%s6 + $0x368] sm:$0xff]
    %v556 = vld [vmem:[%s6 + $0x370] sm:$0xff]
    %v557 = vld [vmem:[%s6 + $0x378] sm:$0xff]
    %v558 = vld [vmem:[%s6 + $0x380] sm:$0xff]
    %v559 = vld [vmem:[%s6 + $0x388] sm:$0xff]
    %v560 = vld [vmem:[%s6 + $0x390] sm:$0xff]
    %v561 = vld [vmem:[%s6 + $0x398] sm:$0xff]
    %v562 = vld [vmem:[%s6 + $0x3a0] sm:$0xff]
    %v563 = vld [vmem:[%s6 + $0x3a8] sm:$0xff]
    %v564 = vld [vmem:[%s6 + $0x3b0] sm:$0xff]
    %v565 = vld [vmem:[%s6 + $0x3b8] sm:$0xff]
    %v566 = vld [vmem:[%s6 + $0x3c0] sm:$0xff]
    %v567 = vld [vmem:[%s6 + $0x3c8] sm:$0xff]
    %v568 = vld [vmem:[%s6 + $0x3d0] sm:$0xff]
    %v569 = vld [vmem:[%s6 + $0x3d8] sm:$0xff]
    %v570 = vld [vmem:[%s6 + $0x3e0] sm:$0xff]
    %v571 = vld [vmem:[%s6 + $0x3e8] sm:$0xff]
    %v572 = vld [vmem:[%s6 + $0x3f0] sm:$0xff]
    %v573 = vld [vmem:[%s6 + $0x3f8] sm:$0xff]
    %v574 = vld [vmem:[%s7] sm:$0x1]
    %v576 = vperm.slane %v574, 0
    %578 = vmatpush.msra.mxu0 %v461
    %579 = vmatpush.msra.mxu0 %v460
    %580 = vmatpush.msra.mxu0 %v459
    %581 = vmatpush.msra.mxu0 %v458
    %582 = vmatpush.msra.mxu0 %v457
    %583 = vmatpush.msra.mxu0 %v456
    %584 = vmatpush.msra.mxu0 %v455
    %585 = vmatpush.msra.mxu0 %v454
    %586 = vmatpush.msra.mxu0 %v453
    %587 = vmatpush.msra.mxu0 %v452
    %588 = vmatpush.msra.mxu0 %v451
    %589 = vmatpush.msra.mxu0 %v450
    %590 = vmatpush.msra.mxu0 %v449
    %591 = vmatpush.msra.mxu0 %v448
    %592 = vmatpush.msra.mxu0 %v447
    %593 = vmatpush.msra.mxu0 %v446
    %594 = vmatmul.f32.gmra.mxu0 %v414
    %v595 = vpop.f32.mrf.mxu0
    %v596 = vadd.f32 %v576, %v595
    %597 = vmatmul.f32.gmra.mxu0 %v422
    %v598 = vpop.f32.mrf.mxu0
    %v599 = vadd.f32 %v576, %v598
    %600 = vmatmul.f32.gmra.mxu0 %v430
    %v601 = vpop.f32.mrf.mxu0
    %v602 = vadd.f32 %v576, %v601
    %603 = vmatmul.f32.gmra.mxu0 %v438
    %v604 = vpop.f32.mrf.mxu0
    %v605 = vadd.f32 %v576, %v604
    %606 = vdwg.mxu0
    %607 = vmatpush.msra.mxu0 %v477
    %608 = vmatpush.msra.mxu0 %v476
    %609 = vmatpush.msra.mxu0 %v475
    %610 = vmatpush.msra.mxu0 %v474
    %611 = vmatpush.msra.mxu0 %v473
    %612 = vmatpush.msra.mxu0 %v472
    %613 = vmatpush.msra.mxu0 %v471
    %614 = vmatpush.msra.mxu0 %v470
    %615 = vmatpush.msra.mxu0 %v469
    %616 = vmatpush.msra.mxu0 %v468
    %617 = vmatpush.msra.mxu0 %v467
    %618 = vmatpush.msra.mxu0 %v466
    %619 = vmatpush.msra.mxu0 %v465
    %620 = vmatpush.msra.mxu0 %v464
    %621 = vmatpush.msra.mxu0 %v463
    %622 = vmatpush.msra.mxu0 %v462
    %623 = vmatmul.f32.gmra.mxu0 %v415
    %v624 = vpop.f32.mrf.mxu0
    %v625 = vadd.f32 %v596, %v624
    %626 = vmatmul.f32.gmra.mxu0 %v423
    %v627 = vpop.f32.mrf.mxu0
    %v628 = vadd.f32 %v599, %v627
    %629 = vmatmul.f32.gmra.mxu0 %v431
    %v630 = vpop.f32.mrf.mxu0
    %v631 = vadd.f32 %v602, %v630
    %632 = vmatmul.f32.gmra.mxu0 %v439
    %v633 = vpop.f32.mrf.mxu0
    %v634 = vadd.f32 %v605, %v633
    %635 = vdwg.mxu0
    %636 = vmatpush.msra.mxu0 %v493
    %637 = vmatpush.msra.mxu0 %v492
    %638 = vmatpush.msra.mxu0 %v491
    %639 = vmatpush.msra.mxu0 %v490
    %640 = vmatpush.msra.mxu0 %v489
    %641 = vmatpush.msra.mxu0 %v488
    %642 = vmatpush.msra.mxu0 %v487
    %643 = vmatpush.msra.mxu0 %v486
    %644 = vmatpush.msra.mxu0 %v485
    %645 = vmatpush.msra.mxu0 %v484
    %646 = vmatpush.msra.mxu0 %v483
    %647 = vmatpush.msra.mxu0 %v482
    %648 = vmatpush.msra.mxu0 %v481
    %649 = vmatpush.msra.mxu0 %v480
    %650 = vmatpush.msra.mxu0 %v479
    %651 = vmatpush.msra.mxu0 %v478
    %652 = vmatmul.f32.gmra.mxu0 %v416
    %v653 = vpop.f32.mrf.mxu0
    %v654 = vadd.f32 %v625, %v653
    %655 = vmatmul.f32.gmra.mxu0 %v424
    %v656 = vpop.f32.mrf.mxu0
    %v657 = vadd.f32 %v628, %v656
    %658 = vmatmul.f32.gmra.mxu0 %v432
    %v659 = vpop.f32.mrf.mxu0
    %v660 = vadd.f32 %v631, %v659
    %661 = vmatmul.f32.gmra.mxu0 %v440
    %v662 = vpop.f32.mrf.mxu0
    %v663 = vadd.f32 %v634, %v662
    %664 = vdwg.mxu0
    %665 = vmatpush.msra.mxu0 %v509
    %666 = vmatpush.msra.mxu0 %v508
    %667 = vmatpush.msra.mxu0 %v507
    %668 = vmatpush.msra.mxu0 %v506
    %669 = vmatpush.msra.mxu0 %v505
    %670 = vmatpush.msra.mxu0 %v504
    %671 = vmatpush.msra.mxu0 %v503
    %672 = vmatpush.msra.mxu0 %v502
    %673 = vmatpush.msra.mxu0 %v501
    %674 = vmatpush.msra.mxu0 %v500
    %675 = vmatpush.msra.mxu0 %v499
    %676 = vmatpush.msra.mxu0 %v498
    %677 = vmatpush.msra.mxu0 %v497
    %678 = vmatpush.msra.mxu0 %v496
    %679 = vmatpush.msra.mxu0 %v495
    %680 = vmatpush.msra.mxu0 %v494
    %681 = vmatmul.f32.gmra.mxu0 %v417
    %v682 = vpop.f32.mrf.mxu0
    %v683 = vadd.f32 %v654, %v682
    %684 = vmatmul.f32.gmra.mxu0 %v425
    %v685 = vpop.f32.mrf.mxu0
    %v686 = vadd.f32 %v657, %v685
    %687 = vmatmul.f32.gmra.mxu0 %v433
    %v688 = vpop.f32.mrf.mxu0
    %v689 = vadd.f32 %v660, %v688
    %690 = vmatmul.f32.gmra.mxu0 %v441
    %v691 = vpop.f32.mrf.mxu0
    %v692 = vadd.f32 %v663, %v691
    %693 = vdwg.mxu0
    %694 = vmatpush.msra.mxu0 %v525
    %695 = vmatpush.msra.mxu0 %v524
    %696 = vmatpush.msra.mxu0 %v523
    %697 = vmatpush.msra.mxu0 %v522
    %698 = vmatpush.msra.mxu0 %v521
    %699 = vmatpush.msra.mxu0 %v520
    %700 = vmatpush.msra.mxu0 %v519
    %701 = vmatpush.msra.mxu0 %v518
    %702 = vmatpush.msra.mxu0 %v517
    %703 = vmatpush.msra.mxu0 %v516
    %704 = vmatpush.msra.mxu0 %v515
    %705 = vmatpush.msra.mxu0 %v514
    %706 = vmatpush.msra.mxu0 %v513
    %707 = vmatpush.msra.mxu0 %v512
    %708 = vmatpush.msra.mxu0 %v511
    %709 = vmatpush.msra.mxu0 %v510
    %710 = vmatmul.f32.gmra.mxu0 %v418
    %v711 = vpop.f32.mrf.mxu0
    %v712 = vadd.f32 %v683, %v711
    %713 = vmatmul.f32.gmra.mxu0 %v426
    %v714 = vpop.f32.mrf.mxu0
    %v715 = vadd.f32 %v686, %v714
    %716 = vmatmul.f32.gmra.mxu0 %v434
    %v717 = vpop.f32.mrf.mxu0
    %v718 = vadd.f32 %v689, %v717
    %719 = vmatmul.f32.gmra.mxu0 %v442
    %v720 = vpop.f32.mrf.mxu0
    %v721 = vadd.f32 %v692, %v720
    %722 = vdwg.mxu0
    %723 = vmatpush.msra.mxu0 %v541
    %724 = vmatpush.msra.mxu0 %v540
    %725 = vmatpush.msra.mxu0 %v539
    %726 = vmatpush.msra.mxu0 %v538
    %727 = vmatpush.msra.mxu0 %v537
    %728 = vmatpush.msra.mxu0 %v536
    %729 = vmatpush.msra.mxu0 %v535
    %730 = vmatpush.msra.mxu0 %v534
    %731 = vmatpush.msra.mxu0 %v533
    %732 = vmatpush.msra.mxu0 %v532
    %733 = vmatpush.msra.mxu0 %v531
    %734 = vmatpush.msra.mxu0 %v530
    %735 = vmatpush.msra.mxu0 %v529
    %736 = vmatpush.msra.mxu0 %v528
    %737 = vmatpush.msra.mxu0 %v527
    %738 = vmatpush.msra.mxu0 %v526
    %739 = vmatmul.f32.gmra.mxu0 %v419
    %v740 = vpop.f32.mrf.mxu0
    %v741 = vadd.f32 %v712, %v740
    %742 = vmatmul.f32.gmra.mxu0 %v427
    %v743 = vpop.f32.mrf.mxu0
    %v744 = vadd.f32 %v715, %v743
    %745 = vmatmul.f32.gmra.mxu0 %v435
    %v746 = vpop.f32.mrf.mxu0
    %v747 = vadd.f32 %v718, %v746
    %748 = vmatmul.f32.gmra.mxu0 %v443
    %v749 = vpop.f32.mrf.mxu0
    %v750 = vadd.f32 %v721, %v749
    %751 = vdwg.mxu0
    %752 = vmatpush.msra.mxu0 %v557
    %753 = vmatpush.msra.mxu0 %v556
    %754 = vmatpush.msra.mxu0 %v555
    %755 = vmatpush.msra.mxu0 %v554
    %756 = vmatpush.msra.mxu0 %v553
    %757 = vmatpush.msra.mxu0 %v552
    %758 = vmatpush.msra.mxu0 %v551
    %759 = vmatpush.msra.mxu0 %v550
    %760 = vmatpush.msra.mxu0 %v549
    %761 = vmatpush.msra.mxu0 %v548
    %762 = vmatpush.msra.mxu0 %v547
    %763 = vmatpush.msra.mxu0 %v546
    %764 = vmatpush.msra.mxu0 %v545
    %765 = vmatpush.msra.mxu0 %v544
    %766 = vmatpush.msra.mxu0 %v543
    %767 = vmatpush.msra.mxu0 %v542
    %768 = vmatmul.f32.gmra.mxu0 %v420
    %v769 = vpop.f32.mrf.mxu0
    %v770 = vadd.f32 %v741, %v769
    %771 = vmatmul.f32.gmra.mxu0 %v428
    %v772 = vpop.f32.mrf.mxu0
    %v773 = vadd.f32 %v744, %v772
    %774 = vmatmul.f32.gmra.mxu0 %v436
    %v775 = vpop.f32.mrf.mxu0
    %v776 = vadd.f32 %v747, %v775
    %777 = vmatmul.f32.gmra.mxu0 %v444
    %v778 = vpop.f32.mrf.mxu0
    %v779 = vadd.f32 %v750, %v778
    %780 = vdwg.mxu0
    %781 = vmatpush.msra.mxu0 %v573
    %782 = vmatpush.msra.mxu0 %v572
    %783 = vmatpush.msra.mxu0 %v571
    %784 = vmatpush.msra.mxu0 %v570
    %785 = vmatpush.msra.mxu0 %v569
    %786 = vmatpush.msra.mxu0 %v568
    %787 = vmatpush.msra.mxu0 %v567
    %788 = vmatpush.msra.mxu0 %v566
    %789 = vmatpush.msra.mxu0 %v565
    %790 = vmatpush.msra.mxu0 %v564
    %791 = vmatpush.msra.mxu0 %v563
    %792 = vmatpush.msra.mxu0 %v562
    %793 = vmatpush.msra.mxu0 %v561
    %794 = vmatpush.msra.mxu0 %v560
    %795 = vmatpush.msra.mxu0 %v559
    %796 = vmatpush.msra.mxu0 %v558
    %797 = vmatmul.f32.gmra.mxu0 %v421
    %v798 = vpop.f32.mrf.mxu0
    %v799 = vadd.f32 %v770, %v798
    %800 = vmatmul.f32.gmra.mxu0 %v429
    %v801 = vpop.f32.mrf.mxu0
    %v802 = vadd.f32 %v773, %v801
    %803 = vmatmul.f32.gmra.mxu0 %v437
    %v804 = vpop.f32.mrf.mxu0
    %v805 = vadd.f32 %v776, %v804
    %806 = vmatmul.f32.gmra.mxu0 %v445
    %v807 = vpop.f32.mrf.mxu0
    %v808 = vadd.f32 %v779, %v807
    %809 = vdwg.mxu0
    %v810 = vmax.f32 %v799, 0.0
    %v811 = vmax.f32 %v802, 0.0
    %v812 = vmax.f32 %v805, 0.0
    %v813 = vmax.f32 %v808, 0.0
    %v814 = vld [vmem:[%s8] sm:$0xff]
    %v815 = vld [vmem:[%s8 + $0x8] sm:$0xff]
    %v816 = vld [vmem:[%s8 + $0x10] sm:$0xff]
    %v817 = vld [vmem:[%s8 + $0x18] sm:$0xff]
    %v818 = vld [vmem:[%s8 + $0x20] sm:$0xff]
    %v819 = vld [vmem:[%s8 + $0x28] sm:$0xff]
    %v820 = vld [vmem:[%s8 + $0x30] sm:$0xff]
    %v821 = vld [vmem:[%s8 + $0x38] sm:$0xff]
    %v822 = vld [vmem:[%s8 + $0x40] sm:$0xff]
    %v823 = vld [vmem:[%s8 + $0x48] sm:$0xff]
    %v824 = vld [vmem:[%s8 + $0x50] sm:$0xff]
    %v825 = vld [vmem:[%s8 + $0x58] sm:$0xff]
    %v826 = vld [vmem:[%s8 + $0x60] sm:$0xff]
    %v827 = vld [vmem:[%s8 + $0x68] sm:$0xff]
    %v828 = vld [vmem:[%s8 + $0x70] sm:$0xff]
    %v829 = vld [vmem:[%s8 + $0x78] sm:$0xff]
    %v830 = vld [vmem:[%s8 + $0x80] sm:$0xff]
    %v831 = vld [vmem:[%s8 + $0x88] sm:$0xff]
    %v832 = vld [vmem:[%s8 + $0x90] sm:$0xff]
    %v833 = vld [vmem:[%s8 + $0x98] sm:$0xff]
    %v834 = vld [vmem:[%s8 + $0xa0] sm:$0xff]
    %v835 = vld [vmem:[%s8 + $0xa8] sm:$0xff]
    %v836 = vld [vmem:[%s8 + $0xb0] sm:$0xff]
    %v837 = vld [vmem:[%s8 + $0xb8] sm:$0xff]
    %v838 = vld [vmem:[%s8 + $0xc0] sm:$0xff]
    %v839 = vld [vmem:[%s8 + $0xc8] sm:$0xff]
    %v840 = vld [vmem:[%s8 + $0xd0] sm:$0xff]
    %v841 = vld [vmem:[%s8 + $0xd8] sm:$0xff]
    %v842 = vld [vmem:[%s8 + $0xe0] sm:$0xff]
    %v843 = vld [vmem:[%s8 + $0xe8] sm:$0xff]
    %v844 = vld [vmem:[%s8 + $0xf0] sm:$0xff]
    %v845 = vld [vmem:[%s8 + $0xf8] sm:$0xff]
    %v846 = vld [vmem:[%s8 + $0x100] sm:$0xff]
    %v847 = vld [vmem:[%s8 + $0x108] sm:$0xff]
    %v848 = vld [vmem:[%s8 + $0x110] sm:$0xff]
    %v849 = vld [vmem:[%s8 + $0x118] sm:$0xff]
    %v850 = vld [vmem:[%s8 + $0x120] sm:$0xff]
    %v851 = vld [vmem:[%s8 + $0x128] sm:$0xff]
    %v852 = vld [vmem:[%s8 + $0x130] sm:$0xff]
    %v853 = vld [vmem:[%s8 + $0x138] sm:$0xff]
    %v854 = vld [vmem:[%s8 + $0x140] sm:$0xff]
    %v855 = vld [vmem:[%s8 + $0x148] sm:$0xff]
    %v856 = vld [vmem:[%s8 + $0x150] sm:$0xff]
    %v857 = vld [vmem:[%s8 + $0x158] sm:$0xff]
    %v858 = vld [vmem:[%s8 + $0x160] sm:$0xff]
    %v859 = vld [vmem:[%s8 + $0x168] sm:$0xff]
    %v860 = vld [vmem:[%s8 + $0x170] sm:$0xff]
    %v861 = vld [vmem:[%s8 + $0x178] sm:$0xff]
    %v862 = vld [vmem:[%s8 + $0x180] sm:$0xff]
    %v863 = vld [vmem:[%s8 + $0x188] sm:$0xff]
    %v864 = vld [vmem:[%s8 + $0x190] sm:$0xff]
    %v865 = vld [vmem:[%s8 + $0x198] sm:$0xff]
    %v866 = vld [vmem:[%s8 + $0x1a0] sm:$0xff]
    %v867 = vld [vmem:[%s8 + $0x1a8] sm:$0xff]
    %v868 = vld [vmem:[%s8 + $0x1b0] sm:$0xff]
    %v869 = vld [vmem:[%s8 + $0x1b8] sm:$0xff]
    %v870 = vld [vmem:[%s8 + $0x1c0] sm:$0xff]
    %v871 = vld [vmem:[%s8 + $0x1c8] sm:$0xff]
    %v872 = vld [vmem:[%s8 + $0x1d0] sm:$0xff]
    %v873 = vld [vmem:[%s8 + $0x1d8] sm:$0xff]
    %v874 = vld [vmem:[%s8 + $0x1e0] sm:$0xff]
    %v875 = vld [vmem:[%s8 + $0x1e8] sm:$0xff]
    %v876 = vld [vmem:[%s8 + $0x1f0] sm:$0xff]
    %v877 = vld [vmem:[%s8 + $0x1f8] sm:$0xff]
    %v878 = vld [vmem:[%s8 + $0x200] sm:$0xff]
    %v879 = vld [vmem:[%s8 + $0x208] sm:$0xff]
    %v880 = vld [vmem:[%s8 + $0x210] sm:$0xff]
    %v881 = vld [vmem:[%s8 + $0x218] sm:$0xff]
    %v882 = vld [vmem:[%s8 + $0x220] sm:$0xff]
    %v883 = vld [vmem:[%s8 + $0x228] sm:$0xff]
    %v884 = vld [vmem:[%s8 + $0x230] sm:$0xff]
    %v885 = vld [vmem:[%s8 + $0x238] sm:$0xff]
    %v886 = vld [vmem:[%s8 + $0x240] sm:$0xff]
    %v887 = vld [vmem:[%s8 + $0x248] sm:$0xff]
    %v888 = vld [vmem:[%s8 + $0x250] sm:$0xff]
    %v889 = vld [vmem:[%s8 + $0x258] sm:$0xff]
    %v890 = vld [vmem:[%s8 + $0x260] sm:$0xff]
    %v891 = vld [vmem:[%s8 + $0x268] sm:$0xff]
    %v892 = vld [vmem:[%s8 + $0x270] sm:$0xff]
    %v893 = vld [vmem:[%s8 + $0x278] sm:$0xff]
    %v894 = vld [vmem:[%s8 + $0x280] sm:$0xff]
    %v895 = vld [vmem:[%s8 + $0x288] sm:$0xff]
    %v896 = vld [vmem:[%s8 + $0x290] sm:$0xff]
    %v897 = vld [vmem:[%s8 + $0x298] sm:$0xff]
    %v898 = vld [vmem:[%s8 + $0x2a0] sm:$0xff]
    %v899 = vld [vmem:[%s8 + $0x2a8] sm:$0xff]
    %v900 = vld [vmem:[%s8 + $0x2b0] sm:$0xff]
    %v901 = vld [vmem:[%s8 + $0x2b8] sm:$0xff]
    %v902 = vld [vmem:[%s8 + $0x2c0] sm:$0xff]
    %v903 = vld [vmem:[%s8 + $0x2c8] sm:$0xff]
    %v904 = vld [vmem:[%s8 + $0x2d0] sm:$0xff]
    %v905 = vld [vmem:[%s8 + $0x2d8] sm:$0xff]
    %v906 = vld [vmem:[%s8 + $0x2e0] sm:$0xff]
    %v907 = vld [vmem:[%s8 + $0x2e8] sm:$0xff]
    %v908 = vld [vmem:[%s8 + $0x2f0] sm:$0xff]
    %v909 = vld [vmem:[%s8 + $0x2f8] sm:$0xff]
    %v910 = vld [vmem:[%s8 + $0x300] sm:$0xff]
    %v911 = vld [vmem:[%s8 + $0x308] sm:$0xff]
    %v912 = vld [vmem:[%s8 + $0x310] sm:$0xff]
    %v913 = vld [vmem:[%s8 + $0x318] sm:$0xff]
    %v914 = vld [vmem:[%s8 + $0x320] sm:$0xff]
    %v915 = vld [vmem:[%s8 + $0x328] sm:$0xff]
    %v916 = vld [vmem:[%s8 + $0x330] sm:$0xff]
    %v917 = vld [vmem:[%s8 + $0x338] sm:$0xff]
    %v918 = vld [vmem:[%s8 + $0x340] sm:$0xff]
    %v919 = vld [vmem:[%s8 + $0x348] sm:$0xff]
    %v920 = vld [vmem:[%s8 + $0x350] sm:$0xff]
    %v921 = vld [vmem:[%s8 + $0x358] sm:$0xff]
    %v922 = vld [vmem:[%s8 + $0x360] sm:$0xff]
    %v923 = vld [vmem:[%s8 + $0x368] sm:$0xff]
    %v924 = vld [vmem:[%s8 + $0x370] sm:$0xff]
    %v925 = vld [vmem:[%s8 + $0x378] sm:$0xff]
    %v926 = vld [vmem:[%s8 + $0x380] sm:$0xff]
    %v927 = vld [vmem:[%s8 + $0x388] sm:$0xff]
    %v928 = vld [vmem:[%s8 + $0x390] sm:$0xff]
    %v929 = vld [vmem:[%s8 + $0x398] sm:$0xff]
    %v930 = vld [vmem:[%s8 + $0x3a0] sm:$0xff]
    %v931 = vld [vmem:[%s8 + $0x3a8] sm:$0xff]
    %v932 = vld [vmem:[%s8 + $0x3b0] sm:$0xff]
    %v933 = vld [vmem:[%s8 + $0x3b8] sm:$0xff]
    %v934 = vld [vmem:[%s8 + $0x3c0] sm:$0xff]
    %v935 = vld [vmem:[%s8 + $0x3c8] sm:$0xff]
    %v936 = vld [vmem:[%s8 + $0x3d0] sm:$0xff]
    %v937 = vld [vmem:[%s8 + $0x3d8] sm:$0xff]
    %v938 = vld [vmem:[%s8 + $0x3e0] sm:$0xff]
    %v939 = vld [vmem:[%s8 + $0x3e8] sm:$0xff]
    %v940 = vld [vmem:[%s8 + $0x3f0] sm:$0xff]
    %v941 = vld [vmem:[%s8 + $0x3f8] sm:$0xff]
    %v942 = vld [vmem:[%s9] sm:$0x3]
    %v944 = vperm.slane %v942, 0
    %v945 = vperm.slane %v942, 1
    %948 = vmatpush.msra.mxu0 %v844
    %949 = vmatpush.msra.mxu0 %v842
    %950 = vmatpush.msra.mxu0 %v840
    %951 = vmatpush.msra.mxu0 %v838
    %952 = vmatpush.msra.mxu0 %v836
    %953 = vmatpush.msra.mxu0 %v834
    %954 = vmatpush.msra.mxu0 %v832
    %955 = vmatpush.msra.mxu0 %v830
    %956 = vmatpush.msra.mxu0 %v828
    %957 = vmatpush.msra.mxu0 %v826
    %958 = vmatpush.msra.mxu0 %v824
    %959 = vmatpush.msra.mxu0 %v822
    %960 = vmatpush.msra.mxu0 %v820
    %961 = vmatpush.msra.mxu0 %v818
    %962 = vmatpush.msra.mxu0 %v816
    %963 = vmatpush.msra.mxu0 %v814
    %964 = vmatmul.f32.gmra.mxu0 %v810
    %v965 = vpop.f32.mrf.mxu0
    %v966 = vadd.f32 %v944, %v965
    %967 = vdwg.mxu0
    %968 = vmatpush.msra.mxu0 %v876
    %969 = vmatpush.msra.mxu0 %v874
    %970 = vmatpush.msra.mxu0 %v872
    %971 = vmatpush.msra.mxu0 %v870
    %972 = vmatpush.msra.mxu0 %v868
    %973 = vmatpush.msra.mxu0 %v866
    %974 = vmatpush.msra.mxu0 %v864
    %975 = vmatpush.msra.mxu0 %v862
    %976 = vmatpush.msra.mxu0 %v860
    %977 = vmatpush.msra.mxu0 %v858
    %978 = vmatpush.msra.mxu0 %v856
    %979 = vmatpush.msra.mxu0 %v854
    %980 = vmatpush.msra.mxu0 %v852
    %981 = vmatpush.msra.mxu0 %v850
    %982 = vmatpush.msra.mxu0 %v848
    %983 = vmatpush.msra.mxu0 %v846
    %984 = vmatmul.f32.gmra.mxu0 %v811
    %v985 = vpop.f32.mrf.mxu0
    %v986 = vadd.f32 %v966, %v985
    %987 = vdwg.mxu0
    %988 = vmatpush.msra.mxu0 %v908
    %989 = vmatpush.msra.mxu0 %v906
    %990 = vmatpush.msra.mxu0 %v904
    %991 = vmatpush.msra.mxu0 %v902
    %992 = vmatpush.msra.mxu0 %v900
    %993 = vmatpush.msra.mxu0 %v898
    %994 = vmatpush.msra.mxu0 %v896
    %995 = vmatpush.msra.mxu0 %v894
    %996 = vmatpush.msra.mxu0 %v892
    %997 = vmatpush.msra.mxu0 %v890
    %998 = vmatpush.msra.mxu0 %v888
    %999 = vmatpush.msra.mxu0 %v886
    %1000 = vmatpush.msra.mxu0 %v884
    %1001 = vmatpush.msra.mxu0 %v882
    %1002 = vmatpush.msra.mxu0 %v880
    %1003 = vmatpush.msra.mxu0 %v878
    %1004 = vmatmul.f32.gmra.mxu0 %v812
    %v1005 = vpop.f32.mrf.mxu0
    %v1006 = vadd.f32 %v986, %v1005
    %1007 = vdwg.mxu0
    %1008 = vmatpush.msra.mxu0 %v940
    %1009 = vmatpush.msra.mxu0 %v938
    %1010 = vmatpush.msra.mxu0 %v936
    %1011 = vmatpush.msra.mxu0 %v934
    %1012 = vmatpush.msra.mxu0 %v932
    %1013 = vmatpush.msra.mxu0 %v930
    %1014 = vmatpush.msra.mxu0 %v928
    %1015 = vmatpush.msra.mxu0 %v926
    %1016 = vmatpush.msra.mxu0 %v924
    %1017 = vmatpush.msra.mxu0 %v922
    %1018 = vmatpush.msra.mxu0 %v920
    %1019 = vmatpush.msra.mxu0 %v918
    %1020 = vmatpush.msra.mxu0 %v916
    %1021 = vmatpush.msra.mxu0 %v914
    %1022 = vmatpush.msra.mxu0 %v912
    %1023 = vmatpush.msra.mxu0 %v910
    %1024 = vmatmul.f32.gmra.mxu0 %v813
    %v1025 = vpop.f32.mrf.mxu0
    %v1026 = vadd.f32 %v1006, %v1025
    %1027 = vdwg.mxu0
    %1028 = vmatpush.msra.mxu0 %v845
    %1029 = vmatpush.msra.mxu0 %v843
    %1030 = vmatpush.msra.mxu0 %v841
    %1031 = vmatpush.msra.mxu0 %v839
    %1032 = vmatpush.msra.mxu0 %v837
    %1033 = vmatpush.msra.mxu0 %v835
    %1034 = vmatpush.msra.mxu0 %v833
    %1035 = vmatpush.msra.mxu0 %v831
    %1036 = vmatpush.msra.mxu0 %v829
    %1037 = vmatpush.msra.mxu0 %v827
    %1038 = vmatpush.msra.mxu0 %v825
    %1039 = vmatpush.msra.mxu0 %v823
    %1040 = vmatpush.msra.mxu0 %v821
    %1041 = vmatpush.msra.mxu0 %v819
    %1042 = vmatpush.msra.mxu0 %v817
    %1043 = vmatpush.msra.mxu0 %v815
    %1044 = vmatmul.f32.gmra.mxu0 %v810
    %v1045 = vpop.f32.mrf.mxu0
    %v1046 = vadd.f32 %v945, %v1045
    %1047 = vdwg.mxu0
    %1048 = vmatpush.msra.mxu0 %v877
    %1049 = vmatpush.msra.mxu0 %v875
    %1050 = vmatpush.msra.mxu0 %v873
    %1051 = vmatpush.msra.mxu0 %v871
    %1052 = vmatpush.msra.mxu0 %v869
    %1053 = vmatpush.msra.mxu0 %v867
    %1054 = vmatpush.msra.mxu0 %v865
    %1055 = vmatpush.msra.mxu0 %v863
    %1056 = vmatpush.msra.mxu0 %v861
    %1057 = vmatpush.msra.mxu0 %v859
    %1058 = vmatpush.msra.mxu0 %v857
    %1059 = vmatpush.msra.mxu0 %v855
    %1060 = vmatpush.msra.mxu0 %v853
    %1061 = vmatpush.msra.mxu0 %v851
    %1062 = vmatpush.msra.mxu0 %v849
    %1063 = vmatpush.msra.mxu0 %v847
    %1064 = vmatmul.f32.gmra.mxu0 %v811
    %v1065 = vpop.f32.mrf.mxu0
    %v1066 = vadd.f32 %v1046, %v1065
    %1067 = vdwg.mxu0
    %1068 = vmatpush.msra.mxu0 %v909
    %1069 = vmatpush.msra.mxu0 %v907
    %1070 = vmatpush.msra.mxu0 %v905
    %1071 = vmatpush.msra.mxu0 %v903
    %1072 = vmatpush.msra.mxu0 %v901
    %1073 = vmatpush.msra.mxu0 %v899
    %1074 = vmatpush.msra.mxu0 %v897
    %1075 = vmatpush.msra.mxu0 %v895
    %1076 = vmatpush.msra.mxu0 %v893
    %1077 = vmatpush.msra.mxu0 %v891
    %1078 = vmatpush.msra.mxu0 %v889
    %1079 = vmatpush.msra.mxu0 %v887
    %1080 = vmatpush.msra.mxu0 %v885
    %1081 = vmatpush.msra.mxu0 %v883
    %1082 = vmatpush.msra.mxu0 %v881
    %1083 = vmatpush.msra.mxu0 %v879
    %1084 = vmatmul.f32.gmra.mxu0 %v812
    %v1085 = vpop.f32.mrf.mxu0
    %v1086 = vadd.f32 %v1066, %v1085
    %1087 = vdwg.mxu0
    %1088 = vmatpush.msra.mxu0 %v941
    %1089 = vmatpush.msra.mxu0 %v939
    %1090 = vmatpush.msra.mxu0 %v937
    %1091 = vmatpush.msra.mxu0 %v935
    %1092 = vmatpush.msra.mxu0 %v933
    %1093 = vmatpush.msra.mxu0 %v931
    %1094 = vmatpush.msra.mxu0 %v929
    %1095 = vmatpush.msra.mxu0 %v927
    %1096 = vmatpush.msra.mxu0 %v925
    %1097 = vmatpush.msra.mxu0 %v923
    %1098 = vmatpush.msra.mxu0 %v921
    %1099 = vmatpush.msra.mxu0 %v919
    %1100 = vmatpush.msra.mxu0 %v917
    %1101 = vmatpush.msra.mxu0 %v915
    %1102 = vmatpush.msra.mxu0 %v913
    %1103 = vmatpush.msra.mxu0 %v911
    %1104 = vmatmul.f32.gmra.mxu0 %v813
    %v1105 = vpop.f32.mrf.mxu0
    %v1106 = vadd.f32 %v1086, %v1105
    %1107 = vdwg.mxu0
    %v1108 = vmax.f32 %v1026, 0.0
    %v1109 = vmax.f32 %v1106, 0.0
    %v1110 = vld [vmem:[%s10] sm:$0xff]
    %v1111 = vld [vmem:[%s10 + $0x8] sm:$0xff]
    %v1112 = vld [vmem:[%s10 + $0x10] sm:$0xff]
    %v1113 = vld [vmem:[%s10 + $0x18] sm:$0xff]
    %v1114 = vld [vmem:[%s10 + $0x20] sm:$0xff]
    %v1115 = vld [vmem:[%s10 + $0x28] sm:$0xff]
    %v1116 = vld [vmem:[%s10 + $0x30] sm:$0xff]
    %v1117 = vld [vmem:[%s10 + $0x38] sm:$0xff]
    %v1118 = vld [vmem:[%s10 + $0x40] sm:$0xff]
    %v1119 = vld [vmem:[%s10 + $0x48] sm:$0xff]
    %v1120 = vld [vmem:[%s10 + $0x50] sm:$0xff]
    %v1121 = vld [vmem:[%s10 + $0x58] sm:$0xff]
    %v1122 = vld [vmem:[%s10 + $0x60] sm:$0xff]
    %v1123 = vld [vmem:[%s10 + $0x68] sm:$0xff]
    %v1124 = vld [vmem:[%s10 + $0x70] sm:$0xff]
    %v1125 = vld [vmem:[%s10 + $0x78] sm:$0xff]
    %v1126 = vld [vmem:[%s10 + $0x80] sm:$0xff]
    %v1127 = vld [vmem:[%s10 + $0x88] sm:$0xff]
    %v1128 = vld [vmem:[%s10 + $0x90] sm:$0xff]
    %v1129 = vld [vmem:[%s10 + $0x98] sm:$0xff]
    %v1130 = vld [vmem:[%s10 + $0xa0] sm:$0xff]
    %v1131 = vld [vmem:[%s10 + $0xa8] sm:$0xff]
    %v1132 = vld [vmem:[%s10 + $0xb0] sm:$0xff]
    %v1133 = vld [vmem:[%s10 + $0xb8] sm:$0xff]
    %v1134 = vld [vmem:[%s10 + $0xc0] sm:$0xff]
    %v1135 = vld [vmem:[%s10 + $0xc8] sm:$0xff]
    %v1136 = vld [vmem:[%s10 + $0xd0] sm:$0xff]
    %v1137 = vld [vmem:[%s10 + $0xd8] sm:$0xff]
    %v1138 = vld [vmem:[%s10 + $0xe0] sm:$0xff]
    %v1139 = vld [vmem:[%s10 + $0xe8] sm:$0xff]
    %v1140 = vld [vmem:[%s10 + $0xf0] sm:$0xff]
    %v1141 = vld [vmem:[%s10 + $0xf8] sm:$0xff]
    %v1142 = vld [vmem:[%s11] sm:$0x1]
    %v1144 = vperm.slane %v1142, 0
    %1146 = vmatpush.msra.mxu0 %v1125
    %1147 = vmatpush.msra.mxu0 %v1124
    %1148 = vmatpush.msra.mxu0 %v1123
    %1149 = vmatpush.msra.mxu0 %v1122
    %1150 = vmatpush.msra.mxu0 %v1121
    %1151 = vmatpush.msra.mxu0 %v1120
    %1152 = vmatpush.msra.mxu0 %v1119
    %1153 = vmatpush.msra.mxu0 %v1118
    %1154 = vmatpush.msra.mxu0 %v1117
    %1155 = vmatpush.msra.mxu0 %v1116
    %1156 = vmatpush.msra.mxu0 %v1115
    %1157 = vmatpush.msra.mxu0 %v1114
    %1158 = vmatpush.msra.mxu0 %v1113
    %1159 = vmatpush.msra.mxu0 %v1112
    %1160 = vmatpush.msra.mxu0 %v1111
    %1161 = vmatpush.msra.mxu0 %v1110
    %1162 = vmatmul.f32.gmra.mxu0 %v1108
    %v1163 = vpop.f32.mrf.mxu0
    %v1164 = vadd.f32 %v1144, %v1163
    %1165 = vdwg.mxu0
    %1166 = vmatpush.msra.mxu0 %v1141
    %1167 = vmatpush.msra.mxu0 %v1140
    %1168 = vmatpush.msra.mxu0 %v1139
    %1169 = vmatpush.msra.mxu0 %v1138
    %1170 = vmatpush.msra.mxu0 %v1137
    %1171 = vmatpush.msra.mxu0 %v1136
    %1172 = vmatpush.msra.mxu0 %v1135
    %1173 = vmatpush.msra.mxu0 %v1134
    %1174 = vmatpush.msra.mxu0 %v1133
    %1175 = vmatpush.msra.mxu0 %v1132
    %1176 = vmatpush.msra.mxu0 %v1131
    %1177 = vmatpush.msra.mxu0 %v1130
    %1178 = vmatpush.msra.mxu0 %v1129
    %1179 = vmatpush.msra.mxu0 %v1128
    %1180 = vmatpush.msra.mxu0 %v1127
    %1181 = vmatpush.msra.mxu0 %v1126
    %1182 = vmatmul.f32.gmra.mxu0 %v1109
    %v1183 = vpop.f32.mrf.mxu0
    %v1184 = vadd.f32 %v1164, %v1183
    %1185 = vdwg.mxu0
    %v1186 = vmax.f32 %v1184, 0.0
    %v1187 = vld [vmem:[%s12] sm:$0xff]
    %v1188 = vld [vmem:[%s12 + $0x8] sm:$0xff]
    %v1189 = vld [vmem:[%s12 + $0x10] sm:$0xff]
    %v1190 = vld [vmem:[%s12 + $0x18] sm:$0xff]
    %v1191 = vld [vmem:[%s12 + $0x20] sm:$0xff]
    %v1192 = vld [vmem:[%s12 + $0x28] sm:$0xff]
    %v1193 = vld [vmem:[%s12 + $0x30] sm:$0xff]
    %v1194 = vld [vmem:[%s12 + $0x38] sm:$0xff]
    %v1195 = vld [vmem:[%s12 + $0x40] sm:$0xff]
    %v1196 = vld [vmem:[%s12 + $0x48] sm:$0xff]
    %v1197 = vld [vmem:[%s12 + $0x50] sm:$0xff]
    %v1198 = vld [vmem:[%s12 + $0x58] sm:$0xff]
    %v1199 = vld [vmem:[%s12 + $0x60] sm:$0xff]
    %v1200 = vld [vmem:[%s12 + $0x68] sm:$0xff]
    %v1201 = vld [vmem:[%s12 + $0x70] sm:$0xff]
    %v1202 = vld [vmem:[%s12 + $0x78] sm:$0xff]
    %v1203 = vld [vmem:[%s14] sm:$0x1]
    %v1205 = vperm.slane %v1203, 0
    %1207 = vmatpush.msra.mxu0 %v1202
    %1208 = vmatpush.msra.mxu0 %v1201
    %1209 = vmatpush.msra.mxu0 %v1200
    %1210 = vmatpush.msra.mxu0 %v1199
    %1211 = vmatpush.msra.mxu0 %v1198
    %1212 = vmatpush.msra.mxu0 %v1197
    %1213 = vmatpush.msra.mxu0 %v1196
    %1214 = vmatpush.msra.mxu0 %v1195
    %1215 = vmatpush.msra.mxu0 %v1194
    %1216 = vmatpush.msra.mxu0 %v1193
    %1217 = vmatpush.msra.mxu0 %v1192
    %1218 = vmatpush.msra.mxu0 %v1191
    %1219 = vmatpush.msra.mxu0 %v1190
    %1220 = vmatpush.msra.mxu0 %v1189
    %1221 = vmatpush.msra.mxu0 %v1188
    %1222 = vmatpush.msra.mxu0 %v1187
    %1223 = vmatmul.f32.gmra.mxu0 %v1186
    %v1224 = vpop.f32.mrf.mxu0
    %v1225 = vadd.f32 %v1205, %v1224
    %1226 = vdwg.mxu0
    %v1227 = vld [vmem:[%s13] sm:$0xff]
    %v1228 = vld [vmem:[%s13 + $0x8] sm:$0xff]
    %v1229 = vld [vmem:[%s13 + $0x10] sm:$0xff]
    %v1230 = vld [vmem:[%s13 + $0x18] sm:$0xff]
    %v1231 = vld [vmem:[%s13 + $0x20] sm:$0xff]
    %v1232 = vld [vmem:[%s13 + $0x28] sm:$0xff]
    %v1233 = vld [vmem:[%s13 + $0x30] sm:$0xff]
    %v1234 = vld [vmem:[%s13 + $0x38] sm:$0xff]
    %v1235 = vld [vmem:[%s15] sm:$0xff]
    %v1236 = vld [vmem:[%s15 + $0x8] sm:$0xff]
    %v1237 = vld [vmem:[%s15 + $0x10] sm:$0xff]
    %v1238 = vld [vmem:[%s15 + $0x18] sm:$0xff]
    %v1239 = vld [vmem:[%s15 + $0x20] sm:$0xff]
    %v1240 = vld [vmem:[%s15 + $0x28] sm:$0xff]
    %v1241 = vld [vmem:[%s15 + $0x30] sm:$0xff]
    %v1242 = vld [vmem:[%s15 + $0x38] sm:$0xff]
    %v1243 = vld [vmem:[%s15 + $0x40] sm:$0xff]
    %v1244 = vld [vmem:[%s15 + $0x48] sm:$0xff]
    %v1245 = vld [vmem:[%s15 + $0x50] sm:$0xff]
    %v1246 = vld [vmem:[%s15 + $0x58] sm:$0xff]
    %v1247 = vld [vmem:[%s15 + $0x60] sm:$0xff]
    %v1248 = vld [vmem:[%s15 + $0x68] sm:$0xff]
    %v1249 = vld [vmem:[%s15 + $0x70] sm:$0xff]
    %v1250 = vld [vmem:[%s15 + $0x78] sm:$0xff]
    %v1251 = vld [vmem:[%s15 + $0x80] sm:$0xff]
    %v1252 = vld [vmem:[%s15 + $0x88] sm:$0xff]
    %v1253 = vld [vmem:[%s15 + $0x90] sm:$0xff]
    %v1254 = vld [vmem:[%s15 + $0x98] sm:$0xff]
    %v1255 = vld [vmem:[%s15 + $0xa0] sm:$0xff]
    %v1256 = vld [vmem:[%s15 + $0xa8] sm:$0xff]
    %v1257 = vld [vmem:[%s15 + $0xb0] sm:$0xff]
    %v1258 = vld [vmem:[%s15 + $0xb8] sm:$0xff]
    %v1259 = vld [vmem:[%s15 + $0xc0] sm:$0xff]
    %v1260 = vld [vmem:[%s15 + $0xc8] sm:$0xff]
    %v1261 = vld [vmem:[%s15 + $0xd0] sm:$0xff]
    %v1262 = vld [vmem:[%s15 + $0xd8] sm:$0xff]
    %v1263 = vld [vmem:[%s15 + $0xe0] sm:$0xff]
    %v1264 = vld [vmem:[%s15 + $0xe8] sm:$0xff]
    %v1265 = vld [vmem:[%s15 + $0xf0] sm:$0xff]
    %v1266 = vld [vmem:[%s15 + $0xf8] sm:$0xff]
    %v1267 = vld [vmem:[%s16] sm:$0x3]
    %v1268 = vld [vmem:[%s19] sm:$0x1]
    %vm1269 = vcmask 523264
    %v1271 = vsel %vm1269, %v1268, 0
    %1273 = vmatpush.msra.mxu0 0.0
    %1274 = vmatpush.msra.mxu0 0.0
    %1275 = vmatpush.msra.mxu0 0.0
    %1276 = vmatpush.msra.mxu0 0.0
    %1277 = vmatpush.msra.mxu0 0.0
    %1278 = vmatpush.msra.mxu0 0.0
    %1279 = vmatpush.msra.mxu0 0.0
    %1280 = vmatpush.msra.mxu0 0.0
    %1281 = vmatpush.msra.mxu0 %v1234
    %1282 = vmatpush.msra.mxu0 %v1233
    %1283 = vmatpush.msra.mxu0 %v1232
    %1284 = vmatpush.msra.mxu0 %v1231
    %1285 = vmatpush.msra.mxu0 %v1230
    %1286 = vmatpush.msra.mxu0 %v1229
    %1287 = vmatpush.msra.mxu0 %v1228
    %1288 = vmatpush.msra.mxu0 %v1227
    %1289 = vmatmul.f32.gmra.mxu0 %v1271
    %v1290 = vpop.f32.mrf.mxu0
    %v1291 = vadd.f32 0.0, %v1290
    %1292 = vdwg.mxu0
    %v1293 = vadd.f32 %v1225, %v1291
    %v1294 = vmul.f32 %v1293, 0.666
    %v1295 = vtanh.pop %v1294
    %v1296 = vmul.f32 %v1295, 1.7159
    %v1298 = vperm.slane %v1267, 0
    %v1299 = vperm.slane %v1267, 1
    %1302 = vmatpush.msra.mxu0 %v1265
    %1303 = vmatpush.msra.mxu0 %v1263
    %1304 = vmatpush.msra.mxu0 %v1261
    %1305 = vmatpush.msra.mxu0 %v1259
    %1306 = vmatpush.msra.mxu0 %v1257
    %1307 = vmatpush.msra.mxu0 %v1255
    %1308 = vmatpush.msra.mxu0 %v1253
    %1309 = vmatpush.msra.mxu0 %v1251
    %1310 = vmatpush.msra.mxu0 %v1249
    %1311 = vmatpush.msra.mxu0 %v1247
    %1312 = vmatpush.msra.mxu0 %v1245
    %1313 = vmatpush.msra.mxu0 %v1243
    %1314 = vmatpush.msra.mxu0 %v1241
    %1315 = vmatpush.msra.mxu0 %v1239
    %1316 = vmatpush.msra.mxu0 %v1237
    %1317 = vmatpush.msra.mxu0 %v1235
    %1318 = vmatmul.f32.gmra.mxu0 %v1296
    %v1319 = vpop.f32.mrf.mxu0
    %v1320 = vadd.f32 %v1298, %v1319
    %1321 = vdwg.mxu0
    %1322 = vmatpush.msra.mxu0 %v1266
    %1323 = vmatpush.msra.mxu0 %v1264
    %1324 = vmatpush.msra.mxu0 %v1262
    %1325 = vmatpush.msra.mxu0 %v1260
    %1326 = vmatpush.msra.mxu0 %v1258
    %1327 = vmatpush.msra.mxu0 %v1256
    %1328 = vmatpush.msra.mxu0 %v1254
    %1329 = vmatpush.msra.mxu0 %v1252
    %1330 = vmatpush.msra.mxu0 %v1250
    %1331 = vmatpush.msra.mxu0 %v1248
    %1332 = vmatpush.msra.mxu0 %v1246
    %1333 = vmatpush.msra.mxu0 %v1244
    %1334 = vmatpush.msra.mxu0 %v1242
    %1335 = vmatpush.msra.mxu0 %v1240
    %1336 = vmatpush.msra.mxu0 %v1238
    %1337 = vmatpush.msra.mxu0 %v1236
    %1338 = vmatmul.f32.gmra.mxu0 %v1296
    %v1339 = vpop.f32.mrf.mxu0
    %v1340 = vadd.f32 %v1299, %v1339
    %1341 = vdwg.mxu0
    %v1342 = vtanh.pop %v1320
    %1344 = vrot.lane.b32.xlu0 %v1340, 64
    %v1345 = vpop.permute.xlu0 %1344
    %v1347 = vadd.f32 %v1340, %v1345
    %v1348 = vxor.u32 %v1347, 2147483648
    %v1349 = vmul.f32 %v1348, 1.442695
    %v1350 = vpow.pop %v1349
    %v1351 = vadd.f32 %v1350, 1.0
    %v1352 = vrcp.pop %v1351
    %v1353 = vmul.f32 %v1351, %v1352
    %v1354 = vsub.f32 1.0, %v1353
    %v1355 = vmul.f32 %v1352, %v1354
    %v1356 = vadd.f32 %v1352, %v1355
    %vm1357 = vweird.f32 %v1351
    %vm1358 = vweird.f32 %v1352
    %vm1359 = vmor %vm1357, %vm1358
    %v1360 = vsel %vm1359, %v1352, %v1356
    %v1361 = vand.u32 2147483647, %v1351
    %vm1362 = vcmp.eq.f32.partialorder %v1361, 8.507059e+37
    %v1363 = vand.u32 %v1351, 2147483648
    %v1364 = vor.u32 1.1754944e-38, %v1363
    %v1365 = vsel %vm1362, %v1364, %v1360
    %v1366 = vmul.f32 1.0, %v1365
    %v1367 = vsub.f32 1.0, %v1366
    %v1368 = vmul.f32 %v1342, %v1367
    %1370 = vrot.lane.b32.xlu0 %v1342, 64
    %v1371 = vpop.permute.xlu0 %1370
    %v1373 = vmul.f32 %v1366, %v1371
    %v1374 = vadd.f32 %v1368, %v1373
    %v1376 = vsel %vm1269, %v1374, 0
    %1378 = vmatpush.msra.mxu0 0.0
    %1379 = vmatpush.msra.mxu0 0.0
    %1380 = vmatpush.msra.mxu0 0.0
    %1381 = vmatpush.msra.mxu0 0.0
    %1382 = vmatpush.msra.mxu0 0.0
    %1383 = vmatpush.msra.mxu0 0.0
    %1384 = vmatpush.msra.mxu0 0.0
    %1385 = vmatpush.msra.mxu0 0.0
    %1386 = vmatpush.msra.mxu0 %v1234
    %1387 = vmatpush.msra.mxu0 %v1233
    %1388 = vmatpush.msra.mxu0 %v1232
    %1389 = vmatpush.msra.mxu0 %v1231
    %1390 = vmatpush.msra.mxu0 %v1230
    %1391 = vmatpush.msra.mxu0 %v1229
    %1392 = vmatpush.msra.mxu0 %v1228
    %1393 = vmatpush.msra.mxu0 %v1227
    %1394 = vmatmul.f32.gmra.mxu0 %v1376
    %v1395 = vpop.f32.mrf.mxu0
    %v1396 = vadd.f32 0.0, %v1395
    %1397 = vdwg.mxu0
    %v1399 = vrot.slane %v1396, 7
    %v1401 = vadd.f32 %v1225, %v1399
    %v1402 = vmul.f32 %v1401, 0.666
    %v1403 = vtanh.pop %v1402
    %v1404 = vmul.f32 %v1403, 1.7159
    %v1406 = vrot.slane %v1404, 1
    %1408 = vmatpush.msra.mxu0 %v1265
    %1409 = vmatpush.msra.mxu0 %v1263
    %1410 = vmatpush.msra.mxu0 %v1261
    %1411 = vmatpush.msra.mxu0 %v1259
    %1412 = vmatpush.msra.mxu0 %v1257
    %1413 = vmatpush.msra.mxu0 %v1255
    %1414 = vmatpush.msra.mxu0 %v1253
    %1415 = vmatpush.msra.mxu0 %v1251
    %1416 = vmatpush.msra.mxu0 %v1249
    %1417 = vmatpush.msra.mxu0 %v1247
    %1418 = vmatpush.msra.mxu0 %v1245
    %1419 = vmatpush.msra.mxu0 %v1243
    %1420 = vmatpush.msra.mxu0 %v1241
    %1421 = vmatpush.msra.mxu0 %v1239
    %1422 = vmatpush.msra.mxu0 %v1237
    %1423 = vmatpush.msra.mxu0 %v1235
    %1424 = vmatmul.f32.gmra.mxu0 %v1406
    %v1425 = vpop.f32.mrf.mxu0
    %v1426 = vadd.f32 %v1298, %v1425
    %1427 = vdwg.mxu0
    %1428 = vmatpush.msra.mxu0 %v1266
    %1429 = vmatpush.msra.mxu0 %v1264
    %1430 = vmatpush.msra.mxu0 %v1262
    %1431 = vmatpush.msra.mxu0 %v1260
    %1432 = vmatpush.msra.mxu0 %v1258
    %1433 = vmatpush.msra.mxu0 %v1256
    %1434 = vmatpush.msra.mxu0 %v1254
    %1435 = vmatpush.msra.mxu0 %v1252
    %1436 = vmatpush.msra.mxu0 %v1250
    %1437 = vmatpush.msra.mxu0 %v1248
    %1438 = vmatpush.msra.mxu0 %v1246
    %1439 = vmatpush.msra.mxu0 %v1244
    %1440 = vmatpush.msra.mxu0 %v1242
    %1441 = vmatpush.msra.mxu0 %v1240
    %1442 = vmatpush.msra.mxu0 %v1238
    %1443 = vmatpush.msra.mxu0 %v1236
    %1444 = vmatmul.f32.gmra.mxu0 %v1406
    %v1445 = vpop.f32.mrf.mxu0
    %v1446 = vadd.f32 %v1299, %v1445
    %1447 = vdwg.mxu0
    %v1448 = vtanh.pop %v1426
    %1450 = vrot.lane.b32.xlu0 %v1446, 64
    %v1451 = vpop.permute.xlu0 %1450
    %v1453 = vadd.f32 %v1446, %v1451
    %v1454 = vxor.u32 %v1453, 2147483648
    %v1455 = vmul.f32 %v1454, 1.442695
    %v1456 = vpow.pop %v1455
    %v1457 = vadd.f32 %v1456, 1.0
    %v1458 = vrcp.pop %v1457
    %v1459 = vmul.f32 %v1457, %v1458
    %v1460 = vsub.f32 1.0, %v1459
    %v1461 = vmul.f32 %v1458, %v1460
    %v1462 = vadd.f32 %v1458, %v1461
    %vm1463 = vweird.f32 %v1457
    %vm1464 = vweird.f32 %v1458
    %vm1465 = vmor %vm1463, %vm1464
    %v1466 = vsel %vm1465, %v1458, %v1462
    %v1467 = vand.u32 2147483647, %v1457
    %vm1468 = vcmp.eq.f32.partialorder %v1467, 8.507059e+37
    %v1469 = vand.u32 %v1457, 2147483648
    %v1470 = vor.u32 1.1754944e-38, %v1469
    %v1471 = vsel %vm1468, %v1470, %v1466
    %v1472 = vmul.f32 1.0, %v1471
    %v1473 = vsub.f32 1.0, %v1472
    %v1474 = vmul.f32 %v1448, %v1473
    %1476 = vrot.lane.b32.xlu0 %v1448, 64
    %v1477 = vpop.permute.xlu0 %1476
    %v1479 = vmul.f32 %v1472, %v1477
    %v1480 = vadd.f32 %v1474, %v1479
    %vm1481 = vcmask 516096
    %1482 = vst.msk [vmem:[#allocation6] sm:$0x1] %vm1481, %v1480
    %v1484 = vrot.slane %v1480, 7
    %vm1486 = vcmask 1040384
    %v1487 = vsel %vm1486, %v1374, %v1484
    %v1488 = vld [vmem:[%s17] sm:$0xff]
    %v1489 = vld [vmem:[%s17 + $0x8] sm:$0xff]
    %v1490 = vld [vmem:[%s17 + $0x10] sm:$0xff]
    %v1491 = vld [vmem:[%s17 + $0x18] sm:$0xff]
    %v1492 = vld [vmem:[%s17 + $0x20] sm:$0xff]
    %v1493 = vld [vmem:[%s17 + $0x28] sm:$0xff]
    %v1494 = vld [vmem:[%s17 + $0x30] sm:$0xff]
    %v1495 = vld [vmem:[%s17 + $0x38] sm:$0xff]
    %v1496 = vld [vmem:[%s18] sm:$0x1]
    %v1498 = vperm.slane %v1496, 0
    %v1501 = vsel %vm1269, %v1487, 0
    %1503 = vmatpush.msra.mxu0 0.0
    %1504 = vmatpush.msra.mxu0 0.0
    %1505 = vmatpush.msra.mxu0 0.0
    %1506 = vmatpush.msra.mxu0 0.0
    %1507 = vmatpush.msra.mxu0 0.0
    %1508 = vmatpush.msra.mxu0 0.0
    %1509 = vmatpush.msra.mxu0 0.0
    %1510 = vmatpush.msra.mxu0 0.0
    %1511 = vmatpush.msra.mxu0 %v1495
    %1512 = vmatpush.msra.mxu0 %v1494
    %1513 = vmatpush.msra.mxu0 %v1493
    %1514 = vmatpush.msra.mxu0 %v1492
    %1515 = vmatpush.msra.mxu0 %v1491
    %1516 = vmatpush.msra.mxu0 %v1490
    %1517 = vmatpush.msra.mxu0 %v1489
    %1518 = vmatpush.msra.mxu0 %v1488
    %1519 = vmatmul.f32.gmra.mxu0 %v1501
    %v1520 = vpop.f32.mrf.mxu0
    %v1521 = vadd.f32 %v1498, %v1520
    %1522 = vdwg.mxu0
    %v1523 = vtanh.pop %v1521
    %v1524 = vadd.f32 %v1523, 1.0
    %v1525 = vmul.f32 %v1524, 4.0
    %v1526 = vmul.f32 %v1525, 0.5
    %v1527 = vadd.f32 %v1526, -2.0
    %vm1528 = vcmask 41984
    %1529 = vst.msk [vmem:[#allocation4] sm:$0x3] %vm1528, %v1527
    // Predicated region
    $region82: #{decoder_forward.1} parent=1 // pred_check
      _
    $region83: #{decoder_forward.1} parent=1 // pred_check_branch
      %1531 = sbr.rel (0) target = $region85
    $region84: #{decoder_forward.1} parent=1 // pred_region
      %1533 = vsyncadd [#allocation5], 0
      %s1535 = sshll.u32 [#allocation4], 4
      %s1536 = int_to_ptr.vmem [resolvable:$true] %s1535
      %s1537 = sshll.u32 %s20, 4
      %s1538 = int_to_ptr.hbm [resolvable:$true] %s1537
      %1540 = dma.vmem_to_hbm [thread:$0]  %s1536, 32, %s1538, [#allocation5]
    $region85: #{decoder_forward.1} parent=1 // pred_fallthru
      _
    // Predicated region
    $region86: #{decoder_forward.1} parent=1 // pred_check
      _
    $region87: #{decoder_forward.1} parent=1 // pred_check_branch
      %1542 = sbr.rel (0) target = $region89
    $region88: #{decoder_forward.1} parent=1 // pred_region
      %1544 = vsyncadd [#allocation7], 0
      %s1546 = sshll.u32 [#allocation6], 4
      %s1547 = int_to_ptr.vmem [resolvable:$true] %s1546
      %s1548 = sshll.u32 %s21, 4
      %s1549 = int_to_ptr.hbm [resolvable:$true] %s1548
      %1551 = dma.vmem_to_hbm [thread:$0]  %s1547, 16, %s1549, [#allocation7]
    $region89: #{decoder_forward.1} parent=1 // pred_fallthru
      _
    // Predicated region
    $region90: #{decoder_forward.1} parent=1 // pred_check
      _
    $region91: #{decoder_forward.1} parent=1 // pred_check_branch
      %1553 = sbr.rel (0) target = $region93
    $region92: #{decoder_forward.1} parent=1 // pred_region
      %1555 = dma.done [#allocation5], 32
    $region93: #{decoder_forward.1} parent=1 // pred_fallthru
      _
    // Predicated region
    $region94: #{decoder_forward.1} parent=1 // pred_check
      _
    $region95: #{decoder_forward.1} parent=1 // pred_check_branch
      %1557 = sbr.rel (0) target = $region97
    $region96: #{decoder_forward.1} parent=1 // pred_region
      %1559 = dma.done [#allocation7], 16
    $region97: #{decoder_forward.1} parent=1 // pred_fallthru
      _
    %1560 = vsyncpa [#allocation5], 1
    %1561 = vsyncpa [#allocation7], 1

</llo_original>
